<compile_context>
chip_gen: v5e
topology: v5e:2x2
jax: 0.10.0
libtpu: 0.0.40
codegen_flags: <defaults>
</compile_context>

<pallas_src>
import jax
import jax.numpy as jnp
from jax.experimental import pallas as pl
from jax.experimental.pallas import tpu as pltpu

LANE = 128
SUBLANE = 8
VMEM_LIMIT = 48 * 1024 * 1024        # v7x-safe (64 MiB physical VMEM)
FAST_PATH_MAX_NODES = 4096           # bf16 A row-block fast path cap (v7x budget)


def _round_up(x, m):
    return (x + m - 1) // m * m


def choose_tiles(num_nodes):
    """Pick (tm, tk, n_pad). tk == n_pad selects the no-K-axis fast path."""
    if num_nodes <= FAST_PATH_MAX_NODES:
        # Fast path: full-width A row blocks; keep >= 2 row tiles when possible
        # so the 'parallel' row axis can shard across v7x's 2 TensorCores.
        tm = 512 if num_nodes > 512 else (256 if num_nodes > 256 else 128)
        n_pad = _round_up(num_nodes, tm)
        return tm, n_pad, n_pad
    # Streamed path: >= 1 MiB A tiles per grid step, K-reduction axis last.
    tm, tk = 512, 1024
    return tm, tk, _round_up(num_nodes, tk)


# ------------------------------------------------------------------ kernels --

def _prop_fused_fast_kernel(a_ref, xw_ref, b_ref, w2_ref, o_ref):
    """One row tile of relu(A_hat @ XW1 + b1) @ W2 (layer-2 XW fused in)."""
    h = jnp.dot(a_ref[...], xw_ref[...], preferred_element_type=jnp.float32)
    h = jnp.maximum(h + b_ref[...], 0.0)
    o_ref[...] = jnp.dot(h.astype(w2_ref.dtype), w2_ref[...],
                         preferred_element_type=jnp.float32).astype(o_ref.dtype)


def _prop_relu_fast_kernel(a_ref, xw_ref, b_ref, o_ref):
    """One row tile of relu(A_hat @ XW + b)."""
    h = jnp.dot(a_ref[...], xw_ref[...], preferred_element_type=jnp.float32)
    o_ref[...] = jnp.maximum(h + b_ref[...], 0.0).astype(o_ref.dtype)


def _pool_fc_kernel(p_ref, h_ref, wfc_ref, bfc_ref, o_ref, acc_ref):
    """global_mean_pool (as P @ H2) fused with the final Linear(out, 1)."""
    k = pl.program_id(0)

    @pl.when(k == 0)
    def _init():
        acc_ref[...] = jnp.zeros_like(acc_ref)

    acc_ref[...] += jnp.dot(p_ref[...], h_ref[...],
                            preferred_element_type=jnp.float32)

    @pl.when(k == pl.num_programs(0) - 1)
    def _finalize():
        pooled = acc_ref[...]                                   # (G_pad, C) f32
        # Final fc as a VPU reduction (no N=1 matmul); lane-dense output slab.
        score = jnp.sum(pooled * wfc_ref[...], axis=-1, keepdims=True)
        o_ref[...] = score + bfc_ref[...]


# ------------------------------------------------------- pallas_call wrappers --

def _prop_fast(a_p, xw_p, b_p, w2_p, *, tm):
    """Fast path: grid over row tiles only (tk == n_pad), XW fully resident."""
    n_pad = a_p.shape[0]
    c_in = xw_p.shape[1]
    fuse = w2_p is not None
    c_out = w2_p.shape[1] if fuse else c_in
    kernel = _prop_fused_fast_kernel if fuse else _prop_relu_fast_kernel

    in_specs = [pl.BlockSpec((tm, n_pad), lambda i: (i, 0)),     # A row block
                pl.BlockSpec((n_pad, c_in), lambda i: (0, 0)),   # XW resident
                pl.BlockSpec((1, c_in), lambda i: (0, 0))]       # bias
    args = [a_p, xw_p, b_p]
    if fuse:
        in_specs.append(pl.BlockSpec((c_in, c_out), lambda i: (0, 0)))
        args.append(w2_p)

    flops = 2 * n_pad * n_pad * c_in + (2 * n_pad * c_in * c_out if fuse else 0)
    bytes_accessed = a_p.size * 2 + xw_p.size * 2 + n_pad * c_out * 2
    return pl.pallas_call(
        kernel,
        out_shape=jax.ShapeDtypeStruct((n_pad, c_out), jnp.bfloat16),
        grid_spec=pltpu.PrefetchScalarGridSpec(
            num_scalar_prefetch=0,
            grid=(n_pad // tm,),
            in_specs=in_specs,
            out_specs=pl.BlockSpec((tm, c_out), lambda i: (i, 0))),
        compiler_params=pltpu.CompilerParams(
            dimension_semantics=("parallel",),
            vmem_limit_bytes=VMEM_LIMIT),
        cost_estimate=pl.CostEstimate(flops=int(flops), transcendentals=0,
                                      bytes_accessed=int(bytes_accessed)),
    )(*args)


def _prop_stream(nnz, eff, a_p, xw_p, b_p, w2_p, *, tm, tk):
    """Streamed path: K-reduction grid axis, f32 accumulator, DMA-level block
    sparsity (eff remap) and fully VMEM-resident XW."""
    n_pad = a_p.shape[0]
    c_in = xw_p.shape[1]
    fuse = w2_p is not None
    c_out = w2_p.shape[1] if fuse else c_in
    rt, kt = n_pad // tm, n_pad // tk

    def kernel(nnz_ref, eff_ref, a_ref, xw_ref, b_ref, *rest):
        if fuse:
            w2_ref, o_ref, acc_ref = rest
        else:
            o_ref, acc_ref = rest
        i = pl.program_id(0)
        k = pl.program_id(1)

        @pl.when(k == 0)
        def _init():
            acc_ref[...] = jnp.zeros_like(acc_ref)

        # Only nonzero adjacency blocks reach the MXU; their DMAs are also
        # skipped via the eff remap in the A index_map below.
        @pl.when(nnz_ref[i * kt + k] > 0)
        def _accumulate():
            row0 = pl.multiple_of(k * tk, tk)
            acc_ref[...] += jnp.dot(a_ref[...], xw_ref[pl.ds(row0, tk), :],
                                    preferred_element_type=jnp.float32)

        @pl.when(k == kt - 1)
        def _finalize():
            h = jnp.maximum(acc_ref[...] + b_ref[...], 0.0)
            if fuse:
                o_ref[...] = jnp.dot(
                    h.astype(w2_ref.dtype), w2_ref[...],
                    preferred_element_type=jnp.float32).astype(o_ref.dtype)
            else:
                o_ref[...] = h.astype(o_ref.dtype)

    in_specs = [
        # Empty (i,k) A blocks remap to the last nonzero k' <= k in the same
        # row block, so the block index is unchanged and Pallas skips the DMA.
        pl.BlockSpec((tm, tk),
                     lambda i, k, nnz_r, eff_r: (i, eff_r[i * kt + k])),
        # XW: full array, constant index -> fetched once, resident in VMEM.
        pl.BlockSpec((n_pad, c_in), lambda i, k, nnz_r, eff_r: (0, 0)),
        pl.BlockSpec((1, c_in), lambda i, k, nnz_r, eff_r: (0, 0)),
    ]
    args = [nnz, eff, a_p, xw_p, b_p]
    if fuse:
        in_specs.append(
            pl.BlockSpec((c_in, c_out), lambda i, k, nnz_r, eff_r: (0, 0)))
        args.append(w2_p)

    flops = 2 * n_pad * n_pad * c_in + (2 * n_pad * c_in * c_out if fuse else 0)
    bytes_accessed = a_p.size * 2 + xw_p.size * 2 + n_pad * c_out * 2
    return pl.pallas_call(
        kernel,
        out_shape=jax.ShapeDtypeStruct((n_pad, c_out), jnp.bfloat16),
        grid_spec=pltpu.PrefetchScalarGridSpec(
            num_scalar_prefetch=2,
            grid=(rt, kt),
            in_specs=in_specs,
            out_specs=pl.BlockSpec((tm, c_out),
                                   lambda i, k, nnz_r, eff_r: (i, 0)),
            scratch_shapes=[pltpu.VMEM((tm, c_in), jnp.float32)]),
        compiler_params=pltpu.CompilerParams(
            dimension_semantics=("parallel", "arbitrary"),
            vmem_limit_bytes=VMEM_LIMIT),
        cost_estimate=pl.CostEstimate(flops=int(flops), transcendentals=0,
                                      bytes_accessed=int(bytes_accessed)),
    )(*args)


def _pool_fc(pool_p, h2, wfc_row, bfc_row, *, tk):
    g_pad, n_pad = pool_p.shape
    c = h2.shape[1]
    return pl.pallas_call(
        _pool_fc_kernel,
        out_shape=jax.ShapeDtypeStruct((g_pad, LANE), jnp.float32),
        grid_spec=pltpu.PrefetchScalarGridSpec(
            num_scalar_prefetch=0,
            grid=(n_pad // tk,),
            in_specs=[pl.BlockSpec((g_pad, tk), lambda k: (0, k)),
                      pl.BlockSpec((tk, c), lambda k: (k, 0)),
                      pl.BlockSpec((1, c), lambda k: (0, 0)),
                      pl.BlockSpec((1, LANE), lambda k: (0, 0))],
            out_specs=pl.BlockSpec((g_pad, LANE), lambda k: (0, 0)),
            scratch_shapes=[pltpu.VMEM((g_pad, c), jnp.float32)]),
        compiler_params=pltpu.CompilerParams(
            dimension_semantics=("arbitrary",),
            vmem_limit_bytes=VMEM_LIMIT),
    )(pool_p, h2, wfc_row, bfc_row)


# ---------------------------------------------------------------- forward ----

def gnn_forward(x, w1, b1_p, w2_p, b2_p, wfc_row, bfc_row,
                a_p, nnz, eff, pool_p, *, tm, tk, num_graphs):
    n = x.shape[0]
    n_pad = a_p.shape[0]
    ch_p = b1_p.shape[1]

    # Layer-1 feature transform: tiny (N, cin)@(cin, hidden) in plain XLA
    # (cin is 16x lane-pad inflated; keeping it off the MXU path costs nothing).
    xw1 = x @ w1
    xw1_p = jnp.zeros((n_pad, ch_p), jnp.bfloat16
                      ).at[:n, :xw1.shape[1]].set(xw1.astype(jnp.bfloat16))

    # F.dropout(p=0.5) is identity in eval mode.
    # TODO(synk): training-mode dropout (pltpu.prng_* Bernoulli mask) not emitted.

    if tk == n_pad:
        # Fast path: no K axis, no accumulator; layer-2's X@W2 fused into the
        # layer-1 propagate finalize (xw2 below is already relu(A@XW1+b1)@W2).
        xw2 = _prop_fast(a_p, xw1_p, b1_p, w2_p, tm=tm)
        h2 = _prop_fast(a_p, xw2, b2_p, None, tm=tm)
    else:
        xw2 = _prop_stream(nnz, eff, a_p, xw1_p, b1_p, w2_p, tm=tm, tk=tk)
        h2 = _prop_stream(nnz, eff, a_p, xw2, b2_p, None, tm=tm, tk=tk)

    # global_mean_pool + fc (lane-dense slab, sliced here).
    tk_pool = n_pad if n_pad <= 8192 else tk
    out = _pool_fc(pool_p, h2, wfc_row, bfc_row, tk=tk_pool)
    return out[:num_graphs, :1]


# ----------------------- one-time, cacheable graph / parameter preprocessing --

def preprocess_graph(edge_index, num_nodes, batch, num_graphs, *, tm, tk, n_pad):
    """Per-graph preprocessing (cache outside the forward): padded bf16 A_hat,
    O(E) per-block nnz / remap tables, padded bf16 mean-pool matrix."""
    src = edge_index[0].astype(jnp.int32)
    dst = edge_index[1].astype(jnp.int32)
    diag = jnp.arange(num_nodes, dtype=jnp.int32)

    # Degree of (A + I) in O(E); messages flow source -> target (PyG GCNConv).
    deg = jnp.ones((num_nodes,), jnp.float32).at[dst].add(1.0)
    d_inv_sqrt = jnp.where(deg > 0, 1.0 / jnp.sqrt(deg), 0.0)

    rows = jnp.concatenate([dst, diag])
    cols = jnp.concatenate([src, diag])
    vals = jnp.concatenate([d_inv_sqrt[dst] * d_inv_sqrt[src],
                            d_inv_sqrt * d_inv_sqrt])

    # A_hat scattered straight into the padded bf16 buffer (no f32 N^2 chain).
    a_p = jnp.zeros((n_pad, n_pad), jnp.bfloat16
                    ).at[rows, cols].add(vals.astype(jnp.bfloat16))

    # Per-(row_block, k_block) nonzero map and "last nonzero k' <= k" remap,
    # computed in O(E) directly from edge_index (exact — no bf16 underflow).
    rt, kt = n_pad // tm, n_pad // tk
    nnz2d = jnp.zeros((rt, kt), jnp.int32).at[rows // tm, cols // tk].add(1)
    ks = jnp.arange(kt, dtype=jnp.int32)
    eff2d = jax.lax.cummax(jnp.where(nnz2d > 0, ks[None, :], -1), axis=1)
    eff2d = jnp.maximum(eff2d, 0).astype(jnp.int32)

    # Mean-pool matrix P[g, i] = 1/|graph g| for node i in graph g, padded bf16.
    onehot = (batch[None, :] == jnp.arange(num_graphs)[:, None]).astype(jnp.float32)
    counts = jnp.maximum(jnp.sum(onehot, axis=1, keepdims=True), 1.0)
    g_pad = _round_up(num_graphs, SUBLANE)
    pool_p = jnp.zeros((g_pad, n_pad), jnp.bfloat16
                       ).at[:num_graphs, :num_nodes].set(
                           (onehot / counts).astype(jnp.bfloat16))

    return a_p, nnz2d.reshape(-1), eff2d.reshape(-1), pool_p


def pad_params(w1, b1, w2, b2, wfc, bfc):
    """Lane-pad the parameters once (w1 stays unpadded: plain-XLA path)."""
    ch = w1.shape[1]
    co = w2.shape[1]
    ch_p, co_p = _round_up(ch, LANE), _round_up(co, LANE)
    b1_p = jnp.zeros((1, ch_p), jnp.float32).at[:, :ch].set(b1)
    w2_p = jnp.zeros((ch_p, co_p), jnp.float32).at[:ch, :co].set(w2).astype(jnp.bfloat16)
    b2_p = jnp.zeros((1, co_p), jnp.float32).at[:, :co].set(b2)
    wfc_row = jnp.zeros((1, co_p), jnp.float32).at[:, :co].set(wfc.T)
    bfc_row = jnp.full((1, LANE), bfc[0, 0], jnp.float32)
    return b1_p, w2_p, b2_p, wfc_row, bfc_row


# ------------------------------------ plain-JAX reference (f32, ground truth) --

def build_normalized_adjacency(edge_index, num_nodes):
    """Dense D^-1/2 (A + I) D^-1/2 as used by PyG GCNConv (add_self_loops)."""
    src, dst = edge_index[0], edge_index[1]
    a = jnp.zeros((num_nodes, num_nodes), jnp.float32)
    a = a.at[dst, src].add(1.0)                 # message flows source -> target
    a = a + jnp.eye(num_nodes, dtype=jnp.float32)
    deg = jnp.sum(a, axis=1)
    d_inv_sqrt = jnp.where(deg > 0, 1.0 / jnp.sqrt(deg), 0.0)
    return a * d_inv_sqrt[:, None] * d_inv_sqrt[None, :]


def build_mean_pool_matrix(batch, num_graphs):
    onehot = (batch[None, :] == jnp.arange(num_graphs)[:, None]).astype(jnp.float32)
    counts = jnp.maximum(jnp.sum(onehot, axis=1, keepdims=True), 1.0)
    return onehot / counts


def init_params(key, in_channels, hidden_channels, out_channels):
    k1, k2, k3 = jax.random.split(key, 3)

    def glorot(k, fan_in, fan_out):
        lim = jnp.sqrt(6.0 / (fan_in + fan_out))
        return jax.random.uniform(k, (fan_in, fan_out), jnp.float32, -lim, lim)

    w1 = glorot(k1, in_channels, hidden_channels)
    b1 = jnp.zeros((1, hidden_channels), jnp.float32)
    w2 = glorot(k2, hidden_channels, out_channels)
    b2 = jnp.zeros((1, out_channels), jnp.float32)
    wfc = glorot(k3, out_channels, 1)
    bfc = jnp.zeros((1, 1), jnp.float32)
    return w1, b1, w2, b2, wfc, bfc


def reference_forward(a_hat, x, w1, b1, w2, b2, pool, wfc, bfc):
    h1 = jnp.maximum(a_hat @ (x @ w1) + b1, 0.0)
    h2 = jnp.maximum(a_hat @ (h1 @ w2) + b2, 0.0)
    return (pool @ h2) @ wfc + bfc


if __name__ == "__main__":
    key = jax.random.PRNGKey(0)
    k_x, k_e, k_p = jax.random.split(key, 3)

    # Small synthetic graph batch: 2 graphs, 100 nodes each.
    nodes_per_graph = 100
    num_graphs = 2
    num_nodes = nodes_per_graph * num_graphs
    in_channels, hidden_channels, out_channels = 8, 32, 16

    x = jax.random.normal(k_x, (num_nodes, in_channels), jnp.float32)

    num_edges = 400
    src = jax.random.randint(k_e, (num_edges,), 0, num_nodes)
    dst = (src + 1 + jax.random.randint(jax.random.fold_in(k_e, 1),
                                        (num_edges,), 0, num_nodes - 1)) % num_nodes
    edge_index = jnp.stack([jnp.concatenate([src, dst]),
                            jnp.concatenate([dst, src])], axis=0)

    batch = jnp.concatenate(
        [jnp.full((nodes_per_graph,), g, jnp.int32) for g in range(num_graphs)])

    # Reference (f32 dense path).
    a_hat = build_normalized_adjacency(edge_index, num_nodes)
    pool = build_mean_pool_matrix(batch, num_graphs)
    w1, b1, w2, b2, wfc, bfc = init_params(k_p, in_channels, hidden_channels,
                                           out_channels)
    ref = reference_forward(a_hat, x, w1, b1, w2, b2, pool, wfc, bfc)

    params_p = pad_params(w1, b1, w2, b2, wfc, bfc)
    fwd = jax.jit(gnn_forward, static_argnames=("tm", "tk", "num_graphs"))

    # --- Fast path (default for n <= 4096): no K axis, fused layer-2 XW. ---
    tm, tk, n_pad = choose_tiles(num_nodes)
    graph = preprocess_graph(edge_index, num_nodes, batch, num_graphs,
                             tm=tm, tk=tk, n_pad=n_pad)
    out = fwd(x, w1, *params_p, *graph, tm=tm, tk=tk, num_graphs=num_graphs)
    out = jax.block_until_ready(out)
    assert out.shape == (num_graphs, 1)
    err_fast = float(jnp.max(jnp.abs(out - ref)))
    assert err_fast < 5e-2, f"fast-path max abs err too large: {err_fast}"

    # --- Streamed path (K-reduction + DMA-skipping block sparsity), forced
    #     with small tiles here purely to exercise/validate that code path. ---
    tm_s, tk_s = 128, 128
    n_pad_s = _round_up(num_nodes, max(tm_s, tk_s))
    graph_s = preprocess_graph(edge_index, num_nodes, batch, num_graphs,
                               tm=tm_s, tk=tk_s, n_pad=n_pad_s)
    out_s = fwd(x, w1, *params_p, *graph_s, tm=tm_s, tk=tk_s,
                num_graphs=num_graphs)
    out_s = jax.block_until_ready(out_s)
    err_stream = float(jnp.max(jnp.abs(out_s - ref)))
    assert err_stream < 5e-2, f"streamed-path max abs err too large: {err_stream}"

    print("KERNEL_OK")
</pallas_src>

<mosaic_0001>
module attributes {stable_mosaic.version = 11 : i64} {
  func.func @_prop_fused_fast_kernel(%arg0: i32, %arg1: memref<128x256xbf16, #tpu.memory_space<vmem>>, %arg2: memref<256x128xbf16, #tpu.memory_space<vmem>>, %arg3: memref<1x128xf32, #tpu.memory_space<vmem>>, %arg4: memref<128x128xbf16, #tpu.memory_space<vmem>>, %arg5: memref<128x128xbf16, #tpu.memory_space<vmem>>) attributes {dimension_semantics = [#tpu.dimension_semantics<parallel>], iteration_bounds = array<i64: 2>, scalar_prefetch = 0 : i64, scratch_operands = 0 : i64, tpu.core_type = #tpu.core_type<tc>, window_params = [{transform_indices = @transform_0, window_bounds = array<i64: 128, 256>}, {pipeline_mode = #tpu.pipeline_mode<synchronous>, transform_indices = @transform_1, window_bounds = array<i64: 256, 128>}, {pipeline_mode = #tpu.pipeline_mode<synchronous>, transform_indices = @transform_2, window_bounds = array<i64: 1, 128>}, {pipeline_mode = #tpu.pipeline_mode<synchronous>, transform_indices = @transform_3, window_bounds = array<i64: 128, 128>}, {transform_indices = @transform_4, window_bounds = array<i64: 128, 128>}]} {
    %c0 = arith.constant 0 : index
    %c0_0 = arith.constant 0 : index
    %0 = vector.load %arg1[%c0, %c0_0] : memref<128x256xbf16, #tpu.memory_space<vmem>>, vector<128x256xbf16>
    %c0_1 = arith.constant 0 : index
    %c0_2 = arith.constant 0 : index
    %1 = vector.load %arg2[%c0_1, %c0_2] : memref<256x128xbf16, #tpu.memory_space<vmem>>, vector<256x128xbf16>
    %cst = arith.constant dense<0.000000e+00> : vector<128x128xf32>
    %2 = tpu.matmul %0, %1, %cst {dimension_numbers = #tpu.dot_dimension_numbers<[1], [0], [0], [1], [0, 0, 1, 1], [], []>} : vector<128x256xbf16>, vector<256x128xbf16>, vector<128x128xf32> -> vector<128x128xf32>
    %c0_3 = arith.constant 0 : index
    %c0_4 = arith.constant 0 : index
    %3 = vector.load %arg3[%c0_3, %c0_4] : memref<1x128xf32, #tpu.memory_space<vmem>>, vector<1x128xf32>
    %4 = vector.broadcast %3 : vector<1x128xf32> to vector<128x128xf32>
    %5 = arith.addf %2, %4 : vector<128x128xf32>
    %cst_5 = arith.constant 0.000000e+00 : f32
    %6 = vector.broadcast %cst_5 : f32 to vector<128x128xf32>
    %7 = arith.maximumf %5, %6 : vector<128x128xf32>
    %8 = arith.truncf %7 : vector<128x128xf32> to vector<128x128xbf16>
    %c0_6 = arith.constant 0 : index
    %c0_7 = arith.constant 0 : index
    %9 = vector.load %arg4[%c0_6, %c0_7] : memref<128x128xbf16, #tpu.memory_space<vmem>>, vector<128x128xbf16>
    %cst_8 = arith.constant dense<0.000000e+00> : vector<128x128xf32>
    %10 = tpu.matmul %8, %9, %cst_8 {dimension_numbers = #tpu.dot_dimension_numbers<[1], [0], [0], [1], [0, 0, 1, 1], [], []>} : vector<128x128xbf16>, vector<128x128xbf16>, vector<128x128xf32> -> vector<128x128xf32>
    %11 = arith.truncf %10 : vector<128x128xf32> to vector<128x128xbf16>
    %c0_9 = arith.constant 0 : index
    %c0_10 = arith.constant 0 : index
    %12 = vector.load %arg5[%c0_9, %c0_10] : memref<128x128xbf16, #tpu.memory_space<vmem>>, vector<128x128xbf16>
    tpu.vector_store %arg5[%c0_9, %c0_10], %11 {strides = array<i32>} : memref<128x128xbf16, #tpu.memory_space<vmem>>, vector<128x128xbf16>,
    return
  }
  func.func @transform_0(%arg0: i32) -> (i32, i32) {
    %c0_i32 = arith.constant 0 : i32
    %c0_i32_0 = arith.constant 0 : i32
    return %arg0, %c0_i32 : i32, i32
  }
  func.func @transform_1(%arg0: i32) -> (i32, i32) {
    %c0_i32 = arith.constant 0 : i32
    %c0_i32_0 = arith.constant 0 : i32
    %c0_i32_1 = arith.constant 0 : i32
    return %c0_i32, %c0_i32_0 : i32, i32
  }
  func.func @transform_2(%arg0: i32) -> (i32, i32) {
    %c0_i32 = arith.constant 0 : i32
    %c0_i32_0 = arith.constant 0 : i32
    %c0_i32_1 = arith.constant 0 : i32
    return %c0_i32, %c0_i32_0 : i32, i32
  }
  func.func @transform_3(%arg0: i32) -> (i32, i32) {
    %c0_i32 = arith.constant 0 : i32
    %c0_i32_0 = arith.constant 0 : i32
    %c0_i32_1 = arith.constant 0 : i32
    return %c0_i32, %c0_i32_0 : i32, i32
  }
  func.func @transform_4(%arg0: i32) -> (i32, i32) {
    %c0_i32 = arith.constant 0 : i32
    %c0_i32_0 = arith.constant 0 : i32
    return %arg0, %c0_i32 : i32, i32
  }
}

module attributes {stable_mosaic.version = 11 : i64} {
  func.func @_prop_relu_fast_kernel(%arg0: i32, %arg1: memref<128x256xbf16, #tpu.memory_space<vmem>>, %arg2: memref<256x128xbf16, #tpu.memory_space<vmem>>, %arg3: memref<1x128xf32, #tpu.memory_space<vmem>>, %arg4: memref<128x128xbf16, #tpu.memory_space<vmem>>) attributes {dimension_semantics = [#tpu.dimension_semantics<parallel>], iteration_bounds = array<i64: 2>, scalar_prefetch = 0 : i64, scratch_operands = 0 : i64, tpu.core_type = #tpu.core_type<tc>, window_params = [{transform_indices = @transform_0, window_bounds = array<i64: 128, 256>}, {pipeline_mode = #tpu.pipeline_mode<synchronous>, transform_indices = @transform_1, window_bounds = array<i64: 256, 128>}, {pipeline_mode = #tpu.pipeline_mode<synchronous>, transform_indices = @transform_2, window_bounds = array<i64: 1, 128>}, {transform_indices = @transform_3, window_bounds = array<i64: 128, 128>}]} {
    %c0 = arith.constant 0 : index
    %c0_0 = arith.constant 0 : index
    %0 = vector.load %arg1[%c0, %c0_0] : memref<128x256xbf16, #tpu.memory_space<vmem>>, vector<128x256xbf16>
    %c0_1 = arith.constant 0 : index
    %c0_2 = arith.constant 0 : index
    %1 = vector.load %arg2[%c0_1, %c0_2] : memref<256x128xbf16, #tpu.memory_space<vmem>>, vector<256x128xbf16>
    %cst = arith.constant dense<0.000000e+00> : vector<128x128xf32>
    %2 = tpu.matmul %0, %1, %cst {dimension_numbers = #tpu.dot_dimension_numbers<[1], [0], [0], [1], [0, 0, 1, 1], [], []>} : vector<128x256xbf16>, vector<256x128xbf16>, vector<128x128xf32> -> vector<128x128xf32>
    %c0_3 = arith.constant 0 : index
    %c0_4 = arith.constant 0 : index
    %3 = vector.load %arg3[%c0_3, %c0_4] : memref<1x128xf32, #tpu.memory_space<vmem>>, vector<1x128xf32>
    %4 = vector.broadcast %3 : vector<1x128xf32> to vector<128x128xf32>
    %5 = arith.addf %2, %4 : vector<128x128xf32>
    %cst_5 = arith.constant 0.000000e+00 : f32
    %6 = vector.broadcast %cst_5 : f32 to vector<128x128xf32>
    %7 = arith.maximumf %5, %6 : vector<128x128xf32>
    %8 = arith.truncf %7 : vector<128x128xf32> to vector<128x128xbf16>
    %c0_6 = arith.constant 0 : index
    %c0_7 = arith.constant 0 : index
    %9 = vector.load %arg4[%c0_6, %c0_7] : memref<128x128xbf16, #tpu.memory_space<vmem>>, vector<128x128xbf16>
    tpu.vector_store %arg4[%c0_6, %c0_7], %8 {strides = array<i32>} : memref<128x128xbf16, #tpu.memory_space<vmem>>, vector<128x128xbf16>,
    return
  }
  func.func @transform_0(%arg0: i32) -> (i32, i32) {
    %c0_i32 = arith.constant 0 : i32
    %c0_i32_0 = arith.constant 0 : i32
    return %arg0, %c0_i32 : i32, i32
  }
  func.func @transform_1(%arg0: i32) -> (i32, i32) {
    %c0_i32 = arith.constant 0 : i32
    %c0_i32_0 = arith.constant 0 : i32
    %c0_i32_1 = arith.constant 0 : i32
    return %c0_i32, %c0_i32_0 : i32, i32
  }
  func.func @transform_2(%arg0: i32) -> (i32, i32) {
    %c0_i32 = arith.constant 0 : i32
    %c0_i32_0 = arith.constant 0 : i32
    %c0_i32_1 = arith.constant 0 : i32
    return %c0_i32, %c0_i32_0 : i32, i32
  }
  func.func @transform_3(%arg0: i32) -> (i32, i32) {
    %c0_i32 = arith.constant 0 : i32
    %c0_i32_0 = arith.constant 0 : i32
    return %arg0, %c0_i32 : i32, i32
  }
}

module attributes {stable_mosaic.version = 11 : i64} {
  func.func @_pool_fc_kernel(%arg0: i32, %arg1: memref<8x256xbf16, #tpu.memory_space<vmem>>, %arg2: memref<256x128xbf16, #tpu.memory_space<vmem>>, %arg3: memref<1x128xf32, #tpu.memory_space<vmem>>, %arg4: memref<1x128xf32, #tpu.memory_space<vmem>>, %arg5: memref<8x128xf32, #tpu.memory_space<vmem>>, %arg6: memref<8x128xf32, #tpu.memory_space<vmem>>) attributes {dimension_semantics = [#tpu.dimension_semantics<arbitrary>], iteration_bounds = array<i64: 1>, scalar_prefetch = 0 : i64, scratch_operands = 1 : i64, tpu.core_type = #tpu.core_type<tc>, window_params = [{transform_indices = @transform_0, window_bounds = array<i64: 8, 256>}, {transform_indices = @transform_1, window_bounds = array<i64: 256, 128>}, {pipeline_mode = #tpu.pipeline_mode<synchronous>, transform_indices = @transform_2, window_bounds = array<i64: 1, 128>}, {pipeline_mode = #tpu.pipeline_mode<synchronous>, transform_indices = @transform_3, window_bounds = array<i64: 1, 128>}, {pipeline_mode = #tpu.pipeline_mode<synchronous>, transform_indices = @transform_4, window_bounds = array<i64: 8, 128>}]} {
    %c0_i32 = arith.constant 0 : i32
    %0 = arith.cmpi eq, %arg0, %c0_i32 : i32
    %1 = arith.extui %0 : i1 to i32
    %c0_i32_0 = arith.constant 0 : i32
    %2 = arith.cmpi ne, %1, %c0_i32_0 : i32
    scf.if %2 {
      %cst_10 = arith.constant 0.000000e+00 : f32
      %12 = vector.broadcast %cst_10 : f32 to vector<8x128xf32>
      %c0_11 = arith.constant 0 : index
      %c0_12 = arith.constant 0 : index
      %13 = vector.load %arg6[%c0_11, %c0_12] : memref<8x128xf32, #tpu.memory_space<vmem>>, vector<8x128xf32>
      tpu.vector_store %arg6[%c0_11, %c0_12], %12 {strides = array<i32>} : memref<8x128xf32, #tpu.memory_space<vmem>>, vector<8x128xf32>,
    } else {
    }
    %c0 = arith.constant 0 : index
    %c0_1 = arith.constant 0 : index
    %3 = vector.load %arg6[%c0, %c0_1] : memref<8x128xf32, #tpu.memory_space<vmem>>, vector<8x128xf32>
    %c0_2 = arith.constant 0 : index
    %c0_3 = arith.constant 0 : index
    %4 = vector.load %arg1[%c0_2, %c0_3] : memref<8x256xbf16, #tpu.memory_space<vmem>>, vector<8x256xbf16>
    %c0_4 = arith.constant 0 : index
    %c0_5 = arith.constant 0 : index
    %5 = vector.load %arg2[%c0_4, %c0_5] : memref<256x128xbf16, #tpu.memory_space<vmem>>, vector<256x128xbf16>
    %cst = arith.constant dense<0.000000e+00> : vector<8x128xf32>
    %6 = tpu.matmul %4, %5, %cst {dimension_numbers = #tpu.dot_dimension_numbers<[1], [0], [0], [1], [0, 0, 1, 1], [], []>} : vector<8x256xbf16>, vector<256x128xbf16>, vector<8x128xf32> -> vector<8x128xf32>
    %7 = arith.addf %3, %6 : vector<8x128xf32>
    %c0_6 = arith.constant 0 : index
    %c0_7 = arith.constant 0 : index
    %8 = vector.load %arg6[%c0_6, %c0_7] : memref<8x128xf32, #tpu.memory_space<vmem>>, vector<8x128xf32>
    tpu.vector_store %arg6[%c0_6, %c0_7], %7 {strides = array<i32>} : memref<8x128xf32, #tpu.memory_space<vmem>>, vector<8x128xf32>,
    %c0_i32_8 = arith.constant 0 : i32
    %9 = arith.cmpi eq, %arg0, %c0_i32_8 : i32
    %10 = arith.extui %9 : i1 to i32
    %c0_i32_9 = arith.constant 0 : i32
    %11 = arith.cmpi ne, %10, %c0_i32_9 : i32
    scf.if %11 {
      %c0_10 = arith.constant 0 : index
      %c0_11 = arith.constant 0 : index
      %12 = vector.load %arg6[%c0_10, %c0_11] : memref<8x128xf32, #tpu.memory_space<vmem>>, vector<8x128xf32>
      %c0_12 = arith.constant 0 : index
      %c0_13 = arith.constant 0 : index
      %13 = vector.load %arg3[%c0_12, %c0_13] : memref<1x128xf32, #tpu.memory_space<vmem>>, vector<1x128xf32>
      %14 = vector.broadcast %13 : vector<1x128xf32> to vector<8x128xf32>
      %15 = arith.mulf %12, %14 : vector<8x128xf32>
      %cst_14 = arith.constant dense<0.000000e+00> : vector<8xf32>
      %16 = vector.multi_reduction <add>, %15, %cst_14 [1] : vector<8x128xf32> to vector<8xf32>
      %17 = vector.shape_cast %16 : vector<8xf32> to vector<8x1xf32>
      %c0_15 = arith.constant 0 : index
      %c0_16 = arith.constant 0 : index
      %18 = vector.load %arg4[%c0_15, %c0_16] : memref<1x128xf32, #tpu.memory_space<vmem>>, vector<1x128xf32>
      %19 = vector.broadcast %17 : vector<8x1xf32> to vector<8x128xf32>
      %20 = vector.broadcast %18 : vector<1x128xf32> to vector<8x128xf32>
      %21 = arith.addf %19, %20 : vector<8x128xf32>
      %c0_17 = arith.constant 0 : index
      %c0_18 = arith.constant 0 : index
      %22 = vector.load %arg5[%c0_17, %c0_18] : memref<8x128xf32, #tpu.memory_space<vmem>>, vector<8x128xf32>
      tpu.vector_store %arg5[%c0_17, %c0_18], %21 {strides = array<i32>} : memref<8x128xf32, #tpu.memory_space<vmem>>, vector<8x128xf32>,
    } else {
    }
    return
  }
  func.func @transform_0(%arg0: i32) -> (i32, i32) {
    %c0_i32 = arith.constant 0 : i32
    %c0_i32_0 = arith.constant 0 : i32
    return %c0_i32, %arg0 : i32, i32
  }
  func.func @transform_1(%arg0: i32) -> (i32, i32) {
    %c0_i32 = arith.constant 0 : i32
    %c0_i32_0 = arith.constant 0 : i32
    return %arg0, %c0_i32 : i32, i32
  }
  func.func @transform_2(%arg0: i32) -> (i32, i32) {
    %c0_i32 = arith.constant 0 : i32
    %c0_i32_0 = arith.constant 0 : i32
    %c0_i32_1 = arith.constant 0 : i32
    return %c0_i32, %c0_i32_0 : i32, i32
  }
  func.func @transform_3(%arg0: i32) -> (i32, i32) {
    %c0_i32 = arith.constant 0 : i32
    %c0_i32_0 = arith.constant 0 : i32
    %c0_i32_1 = arith.constant 0 : i32
    return %c0_i32, %c0_i32_0 : i32, i32
  }
  func.func @transform_4(%arg0: i32) -> (i32, i32) {
    %c0_i32 = arith.constant 0 : i32
    %c0_i32_0 = arith.constant 0 : i32
    %c0_i32_1 = arith.constant 0 : i32
    return %c0_i32, %c0_i32_0 : i32, i32
  }
}

</mosaic_0001>

<llo_original>
// kernel: gnn_forward.3
$region0: #{gnn_forward.3}
  #allocation0 [shape = 'u32[]', space=smem, size = 0x4, offset = 0x4, fixed_abs, tag = 'smem constant byte address 0x4 - core index']
  #allocation1 [shape = 'u32[72,128]{1,0:T(1,128)}', space=vmem, size = 0x9000, scoped, tag = 'internal scratch']
  %s0 = inlined_call_operand.vmem [shape: bf16[256,256], index: 0, kind: input, shape index: {}]
  %s1 = inlined_call_operand.vmem [shape: bf16[256,128], index: 1, kind: input, shape index: {}]
  %s2 = inlined_call_operand.vmem [shape: f32[1,128], index: 2, kind: input, shape index: {}]
  %s3 = inlined_call_operand.vmem [shape: bf16[128,128], index: 3, kind: input, shape index: {}]
  %s4 = inlined_call_operand.vmem [shape: bf16[256,128], index: 4, kind: output, shape index: {}]
  %s5 = sld [smem:[#allocation0]]
  $region49: #{gnn_forward.3} parent=0
    _
  %s7 = ssub.s32 1, %s5
  %s8 = scalar_select 0, %s7, %s5
  loop: start=0, step=1, limit=4
  $region2: #{gnn_forward.3} parent=0 // loop_pre_header
    _
  $region3: #{gnn_forward.3} parent=0 // loop_header
    %s10 = sphi 0, %s14
    %p11 = scmp.ge.s32.totalorder %s10, 4
    %s20 = sphi 0, %s22
    %s23 = sphi 0, %s20
    %s24 = sphi 0, %s23
    %s40 = sphi 0, %s24
    %s44 = sphi 0, %s44
    %s46 = sphi 0, %s44
    %s47 = sphi 0, %s46
    %s61 = sphi 0, %s47
    %s65 = sphi 0, %s65
    %s67 = sphi 0, %s65
    %s68 = sphi 0, %s67
    %s82 = sphi 0, %s68
    %s86 = sphi 0, %s86
    %s88 = sphi 0, %s86
    %s89 = sphi 0, %s88
    %s103 = sphi 0, %s89
    %s109 = sphi 0, %s111
    %s112 = sphi 0, %s109
    %s113 = sphi 0, %s112
    %s129 = sphi 0, %s113
  $region4: #{gnn_forward.3} parent=0 // loop_header_branch
    %13 = sbr.rel (%p11) target = $region8
  $region5: #{gnn_forward.3} parent=0 // loop_body
    %s15 = ssub.s32 %s10, 1
    %s16 = ssub.s32 %s10, 2
    %s17 = sadd.s32 %s10, 1
    %s18 = ssub.s32 %s10, %s17
    %p19 = scmp.eq.s32.totalorder %s18, 0
    %s21 = sadd.s32 %s20, 1
    %s22 = scalar_select %p19, %s20, %s21
    %p25 = pneg %p19
    %p26 = scmp.eq.s32.totalorder %s10, 1
    %p27 = por %p25, %p26
    %p28 = scmp.ne.s32.totalorder %s20, %s23
    %p29 = scmp.eq.s32.totalorder %s10, 0
    %p30 = por %p28, %p29
    %p31 = scmp.ne.s32.totalorder %s20, %s23
    %p32 = scmp.eq.s32.totalorder %s15, 1
    %p33 = por %p31, %p32
    %p34 = scmp.ne.s32.totalorder %s23, %s24
    %p35 = scmp.eq.s32.totalorder %s15, 0
    %p36 = por %p34, %p35
    %p37 = scmp.ne.s32.totalorder %s23, %s24
    %p38 = scmp.eq.s32.totalorder %s16, 1
    %p39 = por %p37, %p38
    %p41 = scmp.ne.s32.totalorder %s24, %s40
    %p42 = scmp.eq.s32.totalorder %s16, 0
    %p43 = por %p41, %p42
    %s45 = sadd.s32 %s44, 1
    %p48 = scmp.eq.s32.totalorder %s10, 1
    %p49 = scmp.ne.s32.totalorder %s44, %s46
    %p50 = scmp.eq.s32.totalorder %s10, 0
    %p51 = por %p49, %p50
    %p52 = scmp.ne.s32.totalorder %s44, %s46
    %p53 = scmp.eq.s32.totalorder %s15, 1
    %p54 = por %p52, %p53
    %p55 = scmp.ne.s32.totalorder %s46, %s47
    %p56 = scmp.eq.s32.totalorder %s15, 0
    %p57 = por %p55, %p56
    %p58 = scmp.ne.s32.totalorder %s46, %s47
    %p59 = scmp.eq.s32.totalorder %s16, 1
    %p60 = por %p58, %p59
    %p62 = scmp.ne.s32.totalorder %s47, %s61
    %p63 = scmp.eq.s32.totalorder %s16, 0
    %p64 = por %p62, %p63
    %s66 = sadd.s32 %s65, 1
    %p69 = scmp.eq.s32.totalorder %s10, 1
    %p70 = scmp.ne.s32.totalorder %s65, %s67
    %p71 = scmp.eq.s32.totalorder %s10, 0
    %p72 = por %p70, %p71
    %p73 = scmp.ne.s32.totalorder %s65, %s67
    %p74 = scmp.eq.s32.totalorder %s15, 1
    %p75 = por %p73, %p74
    %p76 = scmp.ne.s32.totalorder %s67, %s68
    %p77 = scmp.eq.s32.totalorder %s15, 0
    %p78 = por %p76, %p77
    %p79 = scmp.ne.s32.totalorder %s67, %s68
    %p80 = scmp.eq.s32.totalorder %s16, 1
    %p81 = por %p79, %p80
    %p83 = scmp.ne.s32.totalorder %s68, %s82
    %p84 = scmp.eq.s32.totalorder %s16, 0
    %p85 = por %p83, %p84
    %s87 = sadd.s32 %s86, 1
    %p90 = scmp.eq.s32.totalorder %s10, 1
    %p91 = scmp.ne.s32.totalorder %s86, %s88
    %p92 = scmp.eq.s32.totalorder %s10, 0
    %p93 = por %p91, %p92
    %p94 = scmp.ne.s32.totalorder %s86, %s88
    %p95 = scmp.eq.s32.totalorder %s15, 1
    %p96 = por %p94, %p95
    %p97 = scmp.ne.s32.totalorder %s88, %s89
    %p98 = scmp.eq.s32.totalorder %s15, 0
    %p99 = por %p97, %p98
    %p100 = scmp.ne.s32.totalorder %s88, %s89
    %p101 = scmp.eq.s32.totalorder %s16, 1
    %p102 = por %p100, %p101
    %p104 = scmp.ne.s32.totalorder %s89, %s103
    %p105 = scmp.eq.s32.totalorder %s16, 0
    %p106 = por %p104, %p105
    %s107 = ssub.s32 %s10, %s17
    %p108 = scmp.eq.s32.totalorder %s107, 0
    %s110 = sadd.s32 %s109, 1
    %s111 = scalar_select %p108, %s109, %s110
    %p114 = pneg %p108
    %p115 = scmp.eq.s32.totalorder %s10, 1
    %p116 = por %p114, %p115
    %p117 = scmp.ne.s32.totalorder %s109, %s112
    %p118 = scmp.eq.s32.totalorder %s10, 0
    %p119 = por %p117, %p118
    %p120 = scmp.ne.s32.totalorder %s109, %s112
    %p121 = scmp.eq.s32.totalorder %s15, 1
    %p122 = por %p120, %p121
    %p123 = scmp.ne.s32.totalorder %s112, %s113
    %p124 = scmp.eq.s32.totalorder %s15, 0
    %p125 = por %p123, %p124
    %p126 = scmp.ne.s32.totalorder %s112, %s113
    %p127 = scmp.eq.s32.totalorder %s16, 1
    %p128 = por %p126, %p127
    %p130 = scmp.ne.s32.totalorder %s113, %s129
    %p131 = scmp.eq.s32.totalorder %s16, 0
    %p132 = por %p130, %p131
    %p133 = scmp.le.s32.totalorder 1, %s10
    %p134 = scmp.lt.s32.totalorder %s10, 3
    %p135 = pnand %p133, %p134
    %p136 = pneg %p135
    // Predicated region
    $region9: #{gnn_forward.3} parent=5 // pred_check
      _
    $region10: #{gnn_forward.3} parent=5 // pred_check_branch
      %138 = sbr.rel (%p135) target = $region12
    $region11: #{gnn_forward.3} parent=5 // pred_region
      %s139 = ssub.s32 %s10, 1
      // Predicated region
      $region13: #{gnn_forward.3} parent=11 // pred_check
        %p140 = pneg %p57
      $region14: #{gnn_forward.3} parent=11 // pred_check_branch
        %142 = sbr.rel (%p140) target = $region16
      $region15: #{gnn_forward.3} parent=11 // pred_region
        _
      $region16: #{gnn_forward.3} parent=11 // pred_fallthru
        _
      // Predicated region
      $region17: #{gnn_forward.3} parent=11 // pred_check
        %p143 = pneg %p78
      $region18: #{gnn_forward.3} parent=11 // pred_check_branch
        %145 = sbr.rel (%p143) target = $region20
      $region19: #{gnn_forward.3} parent=11 // pred_region
        _
      $region20: #{gnn_forward.3} parent=11 // pred_fallthru
        _
      // Predicated region
      $region21: #{gnn_forward.3} parent=11 // pred_check
        %p146 = pneg %p99
      $region22: #{gnn_forward.3} parent=11 // pred_check_branch
        %148 = sbr.rel (%p146) target = $region24
      $region23: #{gnn_forward.3} parent=11 // pred_region
        _
      $region24: #{gnn_forward.3} parent=11 // pred_fallthru
        _
    $region12: #{gnn_forward.3} parent=5 // pred_fallthru
      _
    %p149 = scmp.lt.s32.totalorder %s10, 2
    // Predicated region
    $region25: #{gnn_forward.3} parent=5 // pred_check
      %p150 = pneg %p149
    $region26: #{gnn_forward.3} parent=5 // pred_check_branch
      %152 = sbr.rel (%p150) target = $region28
    $region27: #{gnn_forward.3} parent=5 // pred_region
      // Predicated region
      $region29: #{gnn_forward.3} parent=27 // pred_check
        %p153 = pneg %p30
      $region30: #{gnn_forward.3} parent=27 // pred_check_branch
        %155 = sbr.rel (%p153) target = $region32
      $region31: #{gnn_forward.3} parent=27 // pred_region
        %s156 = smul.u32 16, %s10
        %p157 = scmp.lt.s32.totalorder %s156, 31
        %s158 = scalar_select %p157, %s156, 31
        %s159 = smul.addr %s158, 2
        %s160 = smul.addr %s159, 4
        %s161 = scalar_lea.vmem %s0, %s160
        %s162 = smul.u32 16, %s10
      $region32: #{gnn_forward.3} parent=27 // pred_fallthru
        _
    $region28: #{gnn_forward.3} parent=5 // pred_fallthru
      _
    %p163 = scmp.le.s32.totalorder 1, %s10
    %p164 = scmp.lt.s32.totalorder %s10, 3
    %p165 = pnand %p163, %p164
    %p166 = pneg %p165
    // Predicated region
    $region33: #{gnn_forward.3} parent=5 // pred_check
      _
    $region34: #{gnn_forward.3} parent=5 // pred_check_branch
      %168 = sbr.rel (%p165) target = $region36
    $region35: #{gnn_forward.3} parent=5 // pred_region
      %s169 = ssub.s32 %s10, 1
      %s170 = smul.u32 16, %s15
      %p171 = scmp.lt.s32.totalorder %s170, 31
      %s172 = scalar_select %p171, %s170, 31
      %s173 = smul.addr %s172, 2
      %s174 = smul.addr %s173, 4
      %s175 = scalar_lea.vmem %s0, %s174
      %p176 = pneg %p36
      %p177 = pneg %p33
      %p178 = pneg %p57
      %p179 = pneg %p54
      %p180 = pneg %p78
      %p181 = pneg %p75
      %p182 = pneg %p99
      %p183 = pneg %p96
      %p184 = pneg %p125
      %p185 = pneg %p122
      %s186 = smul.u32 16, %s15
      %p187 = scmp.lt.s32.totalorder %s186, 31
      %s188 = scalar_select %p187, %s186, 31
      %s189 = smul.addr %s188, 4
      %s190 = scalar_lea.vmem %s4, %s189
      %s191 = smul.u32 16, %s15
      %p192 = scmp.lt.s32.totalorder %s191, 31
      %s193 = scalar_select %p192, %s191, 31
      %s194 = smul.addr %s193, 2
      %s195 = smul.addr %s194, 4
      %s196 = scalar_lea.vmem %s0, %s195
      %s197 = smul.u32 16, %s15
      %s198 = smul.u32 16, %s15
      %p199 = scmp.lt.s32.totalorder %s198, 31
      %s200 = scalar_select %p199, %s198, 31
      %s201 = smul.addr %s200, 4
      %s202 = scalar_lea.vmem %s4, %s201
      %s203 = smul.u32 16, %s15
      %v204 = vld [vmem:[%s196] sm:$0xff]
      %v205 = vld [vmem:[%s196 + $0x8] sm:$0xff]
      %v206 = vld [vmem:[%s196 + $0x10] sm:$0xff]
      %v207 = vld [vmem:[%s196 + $0x18] sm:$0xff]
      %v208 = vld [vmem:[%s196 + $0x20] sm:$0xff]
      %v209 = vld [vmem:[%s196 + $0x28] sm:$0xff]
      %v210 = vld [vmem:[%s196 + $0x30] sm:$0xff]
      %v211 = vld [vmem:[%s196 + $0x38] sm:$0xff]
      %v212 = vld [vmem:[%s196 + $0x40] sm:$0xff]
      %v213 = vld [vmem:[%s196 + $0x48] sm:$0xff]
      %v214 = vld [vmem:[%s196 + $0x50] sm:$0xff]
      %v215 = vld [vmem:[%s196 + $0x58] sm:$0xff]
      %v216 = vld [vmem:[%s196 + $0x60] sm:$0xff]
      %v217 = vld [vmem:[%s196 + $0x68] sm:$0xff]
      %v218 = vld [vmem:[%s196 + $0x70] sm:$0xff]
      %v219 = vld [vmem:[%s196 + $0x78] sm:$0xff]
      %v220 = vld [vmem:[%s1] sm:$0xf]
      %v221 = vld [vmem:[%s1 + $0x4] sm:$0xf]
      %v222 = vld [vmem:[%s1 + $0x8] sm:$0xf]
      %v223 = vld [vmem:[%s1 + $0xc] sm:$0xf]
      %v224 = vld [vmem:[%s1 + $0x10] sm:$0xf]
      %v225 = vld [vmem:[%s1 + $0x14] sm:$0xf]
      %v226 = vld [vmem:[%s1 + $0x18] sm:$0xf]
      %v227 = vld [vmem:[%s1 + $0x1c] sm:$0xf]
      %v228 = vld [vmem:[%s1 + $0x20] sm:$0xf]
      %v229 = vld [vmem:[%s1 + $0x24] sm:$0xf]
      %v230 = vld [vmem:[%s1 + $0x28] sm:$0xf]
      %v231 = vld [vmem:[%s1 + $0x2c] sm:$0xf]
      %v232 = vld [vmem:[%s1 + $0x30] sm:$0xf]
      %v233 = vld [vmem:[%s1 + $0x34] sm:$0xf]
      %v234 = vld [vmem:[%s1 + $0x38] sm:$0xf]
      %v235 = vld [vmem:[%s1 + $0x3c] sm:$0xf]
      %v236 = vld [vmem:[%s1 + $0x40] sm:$0xf]
      %v237 = vld [vmem:[%s1 + $0x44] sm:$0xf]
      %v238 = vld [vmem:[%s1 + $0x48] sm:$0xf]
      %v239 = vld [vmem:[%s1 + $0x4c] sm:$0xf]
      %v240 = vld [vmem:[%s1 + $0x50] sm:$0xf]
      %v241 = vld [vmem:[%s1 + $0x54] sm:$0xf]
      %v242 = vld [vmem:[%s1 + $0x58] sm:$0xf]
      %v243 = vld [vmem:[%s1 + $0x5c] sm:$0xf]
      %v244 = vld [vmem:[%s1 + $0x60] sm:$0xf]
      %v245 = vld [vmem:[%s1 + $0x64] sm:$0xf]
      %v246 = vld [vmem:[%s1 + $0x68] sm:$0xf]
      %v247 = vld [vmem:[%s1 + $0x6c] sm:$0xf]
      %v248 = vld [vmem:[%s1 + $0x70] sm:$0xf]
      %v249 = vld [vmem:[%s1 + $0x74] sm:$0xf]
      %v250 = vld [vmem:[%s1 + $0x78] sm:$0xf]
      %v251 = vld [vmem:[%s1 + $0x7c] sm:$0xf]
      %v252 = vld [vmem:[%s2] sm:$0x1]
      %v254 = vperm.slane %v252, 0
      %v272 = vunpack.c.l.b16 %v204
      %v273 = vunpack.c.h.b16 %v204
      %v274 = vunpack.c.l.b16 %v205
      %v275 = vunpack.c.h.b16 %v205
      %v276 = vunpack.c.l.b16 %v206
      %v277 = vunpack.c.h.b16 %v206
      %v278 = vunpack.c.l.b16 %v207
      %v279 = vunpack.c.h.b16 %v207
      %v280 = vunpack.c.l.b16 %v208
      %v281 = vunpack.c.h.b16 %v208
      %v282 = vunpack.c.l.b16 %v209
      %v283 = vunpack.c.h.b16 %v209
      %v284 = vunpack.c.l.b16 %v210
      %v285 = vunpack.c.h.b16 %v210
      %v286 = vunpack.c.l.b16 %v211
      %v287 = vunpack.c.h.b16 %v211
      %v288 = vunpack.c.l.b16 %v212
      %v289 = vunpack.c.h.b16 %v212
      %v290 = vunpack.c.l.b16 %v213
      %v291 = vunpack.c.h.b16 %v213
      %v292 = vunpack.c.l.b16 %v214
      %v293 = vunpack.c.h.b16 %v214
      %v294 = vunpack.c.l.b16 %v215
      %v295 = vunpack.c.h.b16 %v215
      %v296 = vunpack.c.l.b16 %v216
      %v297 = vunpack.c.h.b16 %v216
      %v298 = vunpack.c.l.b16 %v217
      %v299 = vunpack.c.h.b16 %v217
      %v300 = vunpack.c.l.b16 %v218
      %v301 = vunpack.c.h.b16 %v218
      %v302 = vunpack.c.l.b16 %v219
      %v303 = vunpack.c.h.b16 %v219
      %v304 = vpack.c.b16 %v274, %v272
      %v305 = vpack.c.b16 %v275, %v273
      %v306 = vpack.c.b16 %v278, %v276
      %v307 = vpack.c.b16 %v279, %v277
      %v308 = vpack.c.b16 %v282, %v280
      %v309 = vpack.c.b16 %v283, %v281
      %v310 = vpack.c.b16 %v286, %v284
      %v311 = vpack.c.b16 %v287, %v285
      %v312 = vpack.c.b16 %v290, %v288
      %v313 = vpack.c.b16 %v291, %v289
      %v314 = vpack.c.b16 %v294, %v292
      %v315 = vpack.c.b16 %v295, %v293
      %v316 = vpack.c.b16 %v298, %v296
      %v317 = vpack.c.b16 %v299, %v297
      %v318 = vpack.c.b16 %v302, %v300
      %v319 = vpack.c.b16 %v303, %v301
      %v368 = vunpack.c.l.b16 %v220
      %v369 = vunpack.c.l.b16 %v221
      %v370 = vunpack.c.l.b16 %v222
      %v371 = vunpack.c.l.b16 %v223
      %v372 = vunpack.c.l.b16 %v224
      %v373 = vunpack.c.l.b16 %v225
      %v374 = vunpack.c.l.b16 %v226
      %v375 = vunpack.c.l.b16 %v227
      %v376 = vunpack.c.l.b16 %v228
      %v377 = vunpack.c.l.b16 %v229
      %v378 = vunpack.c.l.b16 %v230
      %v379 = vunpack.c.l.b16 %v231
      %v380 = vunpack.c.l.b16 %v232
      %v381 = vunpack.c.l.b16 %v233
      %v382 = vunpack.c.l.b16 %v234
      %v383 = vunpack.c.l.b16 %v235
      %v384 = vunpack.c.l.b16 %v236
      %v385 = vunpack.c.l.b16 %v237
      %v386 = vunpack.c.l.b16 %v238
      %v387 = vunpack.c.l.b16 %v239
      %v388 = vunpack.c.l.b16 %v240
      %v389 = vunpack.c.l.b16 %v241
      %v390 = vunpack.c.l.b16 %v242
      %v391 = vunpack.c.l.b16 %v243
      %v392 = vunpack.c.l.b16 %v244
      %v393 = vunpack.c.l.b16 %v245
      %v394 = vunpack.c.l.b16 %v246
      %v395 = vunpack.c.l.b16 %v247
      %v396 = vunpack.c.l.b16 %v248
      %v397 = vunpack.c.l.b16 %v249
      %v398 = vunpack.c.l.b16 %v250
      %v399 = vunpack.c.l.b16 %v251
      %v400 = vpack.c.b16 %v369, %v368
      %v401 = vpack.c.b16 %v371, %v370
      %v402 = vpack.c.b16 %v373, %v372
      %v403 = vpack.c.b16 %v375, %v374
      %v404 = vpack.c.b16 %v377, %v376
      %v405 = vpack.c.b16 %v379, %v378
      %v406 = vpack.c.b16 %v381, %v380
      %v407 = vpack.c.b16 %v383, %v382
      %v408 = vpack.c.b16 %v385, %v384
      %v409 = vpack.c.b16 %v387, %v386
      %v410 = vpack.c.b16 %v389, %v388
      %v411 = vpack.c.b16 %v391, %v390
      %v412 = vpack.c.b16 %v393, %v392
      %v413 = vpack.c.b16 %v395, %v394
      %v414 = vpack.c.b16 %v397, %v396
      %v415 = vpack.c.b16 %v399, %v398
      %432 = vmatpush.bf16.msra.mxu0 %v407
      %433 = vmatpush.bf16.msra.mxu0 %v406
      %434 = vmatpush.bf16.msra.mxu0 %v405
      %435 = vmatpush.bf16.msra.mxu0 %v404
      %436 = vmatpush.bf16.msra.mxu0 %v403
      %437 = vmatpush.bf16.msra.mxu0 %v402
      %438 = vmatpush.bf16.msra.mxu0 %v401
      %439 = vmatpush.bf16.msra.mxu0 %v400
      %440 = vmatmul.bf16.gmra.mxu0 %v304
      %v441 = vpop.f32.mrf.mxu0
      %v442 = vadd.f32 %v254, %v441
      %v443 = vpop.f32.mrf.mxu0
      %v444 = vadd.f32 %v254, %v443
      %445 = vmatmul.bf16.gmra.mxu0 %v306
      %v446 = vpop.f32.mrf.mxu0
      %v447 = vadd.f32 %v254, %v446
      %v448 = vpop.f32.mrf.mxu0
      %v449 = vadd.f32 %v254, %v448
      %450 = vmatmul.bf16.gmra.mxu0 %v308
      %v451 = vpop.f32.mrf.mxu0
      %v452 = vadd.f32 %v254, %v451
      %v453 = vpop.f32.mrf.mxu0
      %v454 = vadd.f32 %v254, %v453
      %455 = vmatmul.bf16.gmra.mxu0 %v310
      %v456 = vpop.f32.mrf.mxu0
      %v457 = vadd.f32 %v254, %v456
      %v458 = vpop.f32.mrf.mxu0
      %v459 = vadd.f32 %v254, %v458
      %460 = vmatmul.bf16.gmra.mxu0 %v312
      %v461 = vpop.f32.mrf.mxu0
      %v462 = vadd.f32 %v254, %v461
      %v463 = vpop.f32.mrf.mxu0
      %v464 = vadd.f32 %v254, %v463
      %465 = vmatmul.bf16.gmra.mxu0 %v314
      %v466 = vpop.f32.mrf.mxu0
      %v467 = vadd.f32 %v254, %v466
      %v468 = vpop.f32.mrf.mxu0
      %v469 = vadd.f32 %v254, %v468
      %470 = vmatmul.bf16.gmra.mxu0 %v316
      %v471 = vpop.f32.mrf.mxu0
      %v472 = vadd.f32 %v254, %v471
      %v473 = vpop.f32.mrf.mxu0
      %v474 = vadd.f32 %v254, %v473
      %475 = vmatmul.bf16.gmra.mxu0 %v318
      %v476 = vpop.f32.mrf.mxu0
      %v477 = vadd.f32 %v254, %v476
      %v478 = vpop.f32.mrf.mxu0
      %v479 = vadd.f32 %v254, %v478
      %480 = vdwg.mxu0
      %481 = vmatpush.bf16.msra.mxu0 %v415
      %482 = vmatpush.bf16.msra.mxu0 %v414
      %483 = vmatpush.bf16.msra.mxu0 %v413
      %484 = vmatpush.bf16.msra.mxu0 %v412
      %485 = vmatpush.bf16.msra.mxu0 %v411
      %486 = vmatpush.bf16.msra.mxu0 %v410
      %487 = vmatpush.bf16.msra.mxu0 %v409
      %488 = vmatpush.bf16.msra.mxu0 %v408
      %489 = vmatmul.bf16.gmra.mxu0 %v305
      %v490 = vpop.f32.mrf.mxu0
      %v491 = vadd.f32 %v442, %v490
      %v492 = vpop.f32.mrf.mxu0
      %v493 = vadd.f32 %v444, %v492
      %494 = vmatmul.bf16.gmra.mxu0 %v307
      %v495 = vpop.f32.mrf.mxu0
      %v496 = vadd.f32 %v447, %v495
      %v497 = vpop.f32.mrf.mxu0
      %v498 = vadd.f32 %v449, %v497
      %499 = vmatmul.bf16.gmra.mxu0 %v309
      %v500 = vpop.f32.mrf.mxu0
      %v501 = vadd.f32 %v452, %v500
      %v502 = vpop.f32.mrf.mxu0
      %v503 = vadd.f32 %v454, %v502
      %504 = vmatmul.bf16.gmra.mxu0 %v311
      %v505 = vpop.f32.mrf.mxu0
      %v506 = vadd.f32 %v457, %v505
      %v507 = vpop.f32.mrf.mxu0
      %v508 = vadd.f32 %v459, %v507
      %509 = vmatmul.bf16.gmra.mxu0 %v313
      %v510 = vpop.f32.mrf.mxu0
      %v511 = vadd.f32 %v462, %v510
      %v512 = vpop.f32.mrf.mxu0
      %v513 = vadd.f32 %v464, %v512
      %514 = vmatmul.bf16.gmra.mxu0 %v315
      %v515 = vpop.f32.mrf.mxu0
      %v516 = vadd.f32 %v467, %v515
      %v517 = vpop.f32.mrf.mxu0
      %v518 = vadd.f32 %v469, %v517
      %519 = vmatmul.bf16.gmra.mxu0 %v317
      %v520 = vpop.f32.mrf.mxu0
      %v521 = vadd.f32 %v472, %v520
      %v522 = vpop.f32.mrf.mxu0
      %v523 = vadd.f32 %v474, %v522
      %524 = vmatmul.bf16.gmra.mxu0 %v319
      %v525 = vpop.f32.mrf.mxu0
      %v526 = vadd.f32 %v477, %v525
      %v527 = vpop.f32.mrf.mxu0
      %v528 = vadd.f32 %v479, %v527
      %529 = vdwg.mxu0
      %v530 = vmax.f32 %v491, 0.0
      %v531 = vmax.f32 %v493, 0.0
      %v532 = vmax.f32 %v496, 0.0
      %v533 = vmax.f32 %v498, 0.0
      %v534 = vmax.f32 %v501, 0.0
      %v535 = vmax.f32 %v503, 0.0
      %v536 = vmax.f32 %v506, 0.0
      %v537 = vmax.f32 %v508, 0.0
      %v538 = vmax.f32 %v511, 0.0
      %v539 = vmax.f32 %v513, 0.0
      %v540 = vmax.f32 %v516, 0.0
      %v541 = vmax.f32 %v518, 0.0
      %v542 = vmax.f32 %v521, 0.0
      %v543 = vmax.f32 %v523, 0.0
      %v544 = vmax.f32 %v526, 0.0
      %v545 = vmax.f32 %v528, 0.0
      %v546 = vpack.c.bf16 %v531, %v530
      %v547 = vpack.c.bf16 %v533, %v532
      %v548 = vpack.c.bf16 %v535, %v534
      %v549 = vpack.c.bf16 %v537, %v536
      %v550 = vpack.c.bf16 %v539, %v538
      %v551 = vpack.c.bf16 %v541, %v540
      %v552 = vpack.c.bf16 %v543, %v542
      %v553 = vpack.c.bf16 %v545, %v544
      %v554 = vld [vmem:[%s3] sm:$0xf]
      %v555 = vld [vmem:[%s3 + $0x4] sm:$0xf]
      %v556 = vld [vmem:[%s3 + $0x8] sm:$0xf]
      %v557 = vld [vmem:[%s3 + $0xc] sm:$0xf]
      %v558 = vld [vmem:[%s3 + $0x10] sm:$0xf]
      %v559 = vld [vmem:[%s3 + $0x14] sm:$0xf]
      %v560 = vld [vmem:[%s3 + $0x18] sm:$0xf]
      %v561 = vld [vmem:[%s3 + $0x1c] sm:$0xf]
      %v562 = vld [vmem:[%s3 + $0x20] sm:$0xf]
      %v563 = vld [vmem:[%s3 + $0x24] sm:$0xf]
      %v564 = vld [vmem:[%s3 + $0x28] sm:$0xf]
      %v565 = vld [vmem:[%s3 + $0x2c] sm:$0xf]
      %v566 = vld [vmem:[%s3 + $0x30] sm:$0xf]
      %v567 = vld [vmem:[%s3 + $0x34] sm:$0xf]
      %v568 = vld [vmem:[%s3 + $0x38] sm:$0xf]
      %v569 = vld [vmem:[%s3 + $0x3c] sm:$0xf]
      %v586 = vunpack.c.l.b16 %v554
      %v587 = vunpack.c.l.b16 %v555
      %v588 = vunpack.c.l.b16 %v556
      %v589 = vunpack.c.l.b16 %v557
      %v590 = vunpack.c.l.b16 %v558
      %v591 = vunpack.c.l.b16 %v559
      %v592 = vunpack.c.l.b16 %v560
      %v593 = vunpack.c.l.b16 %v561
      %v594 = vunpack.c.l.b16 %v562
      %v595 = vunpack.c.l.b16 %v563
      %v596 = vunpack.c.l.b16 %v564
      %v597 = vunpack.c.l.b16 %v565
      %v598 = vunpack.c.l.b16 %v566
      %v599 = vunpack.c.l.b16 %v567
      %v600 = vunpack.c.l.b16 %v568
      %v601 = vunpack.c.l.b16 %v569
      %v602 = vpack.c.b16 %v587, %v586
      %v603 = vpack.c.b16 %v589, %v588
      %v604 = vpack.c.b16 %v591, %v590
      %v605 = vpack.c.b16 %v593, %v592
      %v606 = vpack.c.b16 %v595, %v594
      %v607 = vpack.c.b16 %v597, %v596
      %v608 = vpack.c.b16 %v599, %v598
      %v609 = vpack.c.b16 %v601, %v600
      %618 = vmatpush.bf16.msra.mxu0 %v609
      %619 = vmatpush.bf16.msra.mxu0 %v608
      %620 = vmatpush.bf16.msra.mxu0 %v607
      %621 = vmatpush.bf16.msra.mxu0 %v606
      %622 = vmatpush.bf16.msra.mxu0 %v605
      %623 = vmatpush.bf16.msra.mxu0 %v604
      %624 = vmatpush.bf16.msra.mxu0 %v603
      %625 = vmatpush.bf16.msra.mxu0 %v602
      %626 = vmatmul.bf16.gmra.mxu0 %v546
      %v627 = vpop.f32.mrf.mxu0
      %v628 = vadd.f32 0.0, %v627
      %v629 = vpop.f32.mrf.mxu0
      %v630 = vadd.f32 0.0, %v629
      %631 = vmatmul.bf16.gmra.mxu0 %v547
      %v632 = vpop.f32.mrf.mxu0
      %v633 = vadd.f32 0.0, %v632
      %v634 = vpop.f32.mrf.mxu0
      %v635 = vadd.f32 0.0, %v634
      %636 = vmatmul.bf16.gmra.mxu0 %v548
      %v637 = vpop.f32.mrf.mxu0
      %v638 = vadd.f32 0.0, %v637
      %v639 = vpop.f32.mrf.mxu0
      %v640 = vadd.f32 0.0, %v639
      %641 = vmatmul.bf16.gmra.mxu0 %v549
      %v642 = vpop.f32.mrf.mxu0
      %v643 = vadd.f32 0.0, %v642
      %v644 = vpop.f32.mrf.mxu0
      %v645 = vadd.f32 0.0, %v644
      %646 = vmatmul.bf16.gmra.mxu0 %v550
      %v647 = vpop.f32.mrf.mxu0
      %v648 = vadd.f32 0.0, %v647
      %v649 = vpop.f32.mrf.mxu0
      %v650 = vadd.f32 0.0, %v649
      %651 = vmatmul.bf16.gmra.mxu0 %v551
      %v652 = vpop.f32.mrf.mxu0
      %v653 = vadd.f32 0.0, %v652
      %v654 = vpop.f32.mrf.mxu0
      %v655 = vadd.f32 0.0, %v654
      %656 = vmatmul.bf16.gmra.mxu0 %v552
      %v657 = vpop.f32.mrf.mxu0
      %v658 = vadd.f32 0.0, %v657
      %v659 = vpop.f32.mrf.mxu0
      %v660 = vadd.f32 0.0, %v659
      %661 = vmatmul.bf16.gmra.mxu0 %v553
      %v662 = vpop.f32.mrf.mxu0
      %v663 = vadd.f32 0.0, %v662
      %v664 = vpop.f32.mrf.mxu0
      %v665 = vadd.f32 0.0, %v664
      %666 = vdwg.mxu0
      %v667 = vpack.c.bf16 %v628, %v628
      %v668 = vpack.c.bf16 %v630, %v630
      %v669 = vpack.c.bf16 %v633, %v633
      %v670 = vpack.c.bf16 %v635, %v635
      %v671 = vpack.c.bf16 %v638, %v638
      %v672 = vpack.c.bf16 %v640, %v640
      %v673 = vpack.c.bf16 %v643, %v643
      %v674 = vpack.c.bf16 %v645, %v645
      %v675 = vpack.c.bf16 %v648, %v648
      %v676 = vpack.c.bf16 %v650, %v650
      %v677 = vpack.c.bf16 %v653, %v653
      %v678 = vpack.c.bf16 %v655, %v655
      %v679 = vpack.c.bf16 %v658, %v658
      %v680 = vpack.c.bf16 %v660, %v660
      %v681 = vpack.c.bf16 %v663, %v663
      %v682 = vpack.c.bf16 %v665, %v665
      %683 = vst [vmem:[%s202] sm:$0xf] %v667
      %684 = vst [vmem:[%s202 + $0x4] sm:$0xf] %v668
      %685 = vst [vmem:[%s202 + $0x8] sm:$0xf] %v669
      %686 = vst [vmem:[%s202 + $0xc] sm:$0xf] %v670
      %687 = vst [vmem:[%s202 + $0x10] sm:$0xf] %v671
      %688 = vst [vmem:[%s202 + $0x14] sm:$0xf] %v672
      %689 = vst [vmem:[%s202 + $0x18] sm:$0xf] %v673
      %690 = vst [vmem:[%s202 + $0x1c] sm:$0xf] %v674
      %691 = vst [vmem:[%s202 + $0x20] sm:$0xf] %v675
      %692 = vst [vmem:[%s202 + $0x24] sm:$0xf] %v676
      %693 = vst [vmem:[%s202 + $0x28] sm:$0xf] %v677
      %694 = vst [vmem:[%s202 + $0x2c] sm:$0xf] %v678
      %695 = vst [vmem:[%s202 + $0x30] sm:$0xf] %v679
      %696 = vst [vmem:[%s202 + $0x34] sm:$0xf] %v680
      %697 = vst [vmem:[%s202 + $0x38] sm:$0xf] %v681
      %698 = vst [vmem:[%s202 + $0x3c] sm:$0xf] %v682
      %s699 = smul.u32 16, %s15
      %p700 = scmp.lt.s32.totalorder %s699, 31
      %s701 = scalar_select %p700, %s699, 31
      %s702 = smul.addr %s701, 4
      %s703 = scalar_lea.vmem %s4, %s702
      // Predicated region
      $region37: #{gnn_forward.3} parent=35 // pred_check
        %p704 = pneg %p122
      $region38: #{gnn_forward.3} parent=35 // pred_check_branch
        %706 = sbr.rel (%p704) target = $region40
      $region39: #{gnn_forward.3} parent=35 // pred_region
        %s707 = smul.u32 16, %s15
      $region40: #{gnn_forward.3} parent=35 // pred_fallthru
        _
    $region36: #{gnn_forward.3} parent=5 // pred_fallthru
      _
    %p708 = scmp.le.s32.totalorder 2, %s10
    // Predicated region
    $region41: #{gnn_forward.3} parent=5 // pred_check
      %p709 = pneg %p708
    $region42: #{gnn_forward.3} parent=5 // pred_check_branch
      %711 = sbr.rel (%p709) target = $region44
    $region43: #{gnn_forward.3} parent=5 // pred_region
      %s712 = ssub.s32 %s10, 2
      // Predicated region
      $region45: #{gnn_forward.3} parent=43 // pred_check
        %p713 = pneg %p128
      $region46: #{gnn_forward.3} parent=43 // pred_check_branch
        %715 = sbr.rel (%p713) target = $region48
      $region47: #{gnn_forward.3} parent=43 // pred_region
        %s716 = smul.u32 16, %s16
        %p717 = scmp.lt.s32.totalorder %s716, 31
        %s718 = scalar_select %p717, %s716, 31
        %s719 = smul.addr %s718, 4
        %s720 = scalar_lea.vmem %s4, %s719
      $region48: #{gnn_forward.3} parent=43 // pred_fallthru
        _
    $region44: #{gnn_forward.3} parent=5 // pred_fallthru
      _
  $region6: #{gnn_forward.3} parent=0 // loop_footer
    %s14 = sadd.s32 1, %s10
  $region7: #{gnn_forward.3} parent=0 // loop_footer_branch
    %9 = sbr.rel target = $region3
  $region8: #{gnn_forward.3} parent=0 // loop_exit
    _

// kernel: gnn_forward.5
$region0: #{gnn_forward.5}
  #allocation0 [shape = 'u32[]', space=smem, size = 0x4, offset = 0x4, fixed_abs, tag = 'smem constant byte address 0x4 - core index']
  #allocation1 [shape = 'u32[72,128]{1,0:T(1,128)}', space=vmem, size = 0x9000, scoped, tag = 'internal scratch']
  #allocation2 [shape = 'f32[8,128]{1,0:T(8,128)}', space=vmem, size = 0x1000, scoped, tag = 'scratch operand']
  %s0 = inlined_call_operand.vmem [shape: bf16[8,256], index: 0, kind: input, shape index: {}]
  %s1 = inlined_call_operand.vmem [shape: bf16[256,128], index: 1, kind: input, shape index: {}]
  %s2 = inlined_call_operand.vmem [shape: f32[1,128], index: 2, kind: input, shape index: {}]
  %s3 = inlined_call_operand.vmem [shape: f32[1,128], index: 3, kind: input, shape index: {}]
  %s4 = inlined_call_operand.vmem [shape: f32[8,128], index: 4, kind: output, shape index: {}]
  %s5 = sld [smem:[#allocation0]]
  $region34: #{gnn_forward.5} parent=0
    _
  %s7 = ssub.s32 1, %s5
  %s8 = scalar_select 0, %s7, %s5
  // Predicated region
  $region2: #{gnn_forward.5} parent=0 // pred_check
    _
  $region3: #{gnn_forward.5} parent=0 // pred_check_branch
    %10 = sbr.rel (0) target = $region5
  $region4: #{gnn_forward.5} parent=0 // pred_region
    _
  $region5: #{gnn_forward.5} parent=0 // pred_fallthru
    _
  // Predicated region
  $region6: #{gnn_forward.5} parent=0 // pred_check
    _
  $region7: #{gnn_forward.5} parent=0 // pred_check_branch
    %12 = sbr.rel (0) target = $region9
  $region8: #{gnn_forward.5} parent=0 // pred_region
    _
  $region9: #{gnn_forward.5} parent=0 // pred_fallthru
    _
  // Predicated region
  $region10: #{gnn_forward.5} parent=0 // pred_check
    _
  $region11: #{gnn_forward.5} parent=0 // pred_check_branch
    %14 = sbr.rel (0) target = $region13
  $region12: #{gnn_forward.5} parent=0 // pred_region
    _
  $region13: #{gnn_forward.5} parent=0 // pred_fallthru
    _
  // Predicated region
  $region14: #{gnn_forward.5} parent=0 // pred_check
    _
  $region15: #{gnn_forward.5} parent=0 // pred_check_branch
    %16 = sbr.rel (0) target = $region17
  $region16: #{gnn_forward.5} parent=0 // pred_region
    _
  $region17: #{gnn_forward.5} parent=0 // pred_fallthru
    _
  %p17 = scmp.eq.s32.totalorder 0, 0
  // Predicated region
  $region18: #{gnn_forward.5} parent=0 // pred_check
    %p18 = pneg %p17
  $region19: #{gnn_forward.5} parent=0 // pred_check_branch
    %20 = sbr.rel (%p18) target = $region21
  $region20: #{gnn_forward.5} parent=0 // pred_region
    %21 = vst [vmem:[#allocation2] sm:$0xff] 0.0
  $region21: #{gnn_forward.5} parent=0 // pred_fallthru
    _
  %v22 = vld [vmem:[#allocation2] sm:$0xff]
  %v23 = vld [vmem:[%s0] sm:$0xff]
  %v24 = vld [vmem:[%s1] sm:$0xf]
  %v25 = vld [vmem:[%s1 + $0x4] sm:$0xf]
  %v26 = vld [vmem:[%s1 + $0x8] sm:$0xf]
  %v27 = vld [vmem:[%s1 + $0xc] sm:$0xf]
  %v28 = vld [vmem:[%s1 + $0x10] sm:$0xf]
  %v29 = vld [vmem:[%s1 + $0x14] sm:$0xf]
  %v30 = vld [vmem:[%s1 + $0x18] sm:$0xf]
  %v31 = vld [vmem:[%s1 + $0x1c] sm:$0xf]
  %v32 = vld [vmem:[%s1 + $0x20] sm:$0xf]
  %v33 = vld [vmem:[%s1 + $0x24] sm:$0xf]
  %v34 = vld [vmem:[%s1 + $0x28] sm:$0xf]
  %v35 = vld [vmem:[%s1 + $0x2c] sm:$0xf]
  %v36 = vld [vmem:[%s1 + $0x30] sm:$0xf]
  %v37 = vld [vmem:[%s1 + $0x34] sm:$0xf]
  %v38 = vld [vmem:[%s1 + $0x38] sm:$0xf]
  %v39 = vld [vmem:[%s1 + $0x3c] sm:$0xf]
  %v40 = vld [vmem:[%s1 + $0x40] sm:$0xf]
  %v41 = vld [vmem:[%s1 + $0x44] sm:$0xf]
  %v42 = vld [vmem:[%s1 + $0x48] sm:$0xf]
  %v43 = vld [vmem:[%s1 + $0x4c] sm:$0xf]
  %v44 = vld [vmem:[%s1 + $0x50] sm:$0xf]
  %v45 = vld [vmem:[%s1 + $0x54] sm:$0xf]
  %v46 = vld [vmem:[%s1 + $0x58] sm:$0xf]
  %v47 = vld [vmem:[%s1 + $0x5c] sm:$0xf]
  %v48 = vld [vmem:[%s1 + $0x60] sm:$0xf]
  %v49 = vld [vmem:[%s1 + $0x64] sm:$0xf]
  %v50 = vld [vmem:[%s1 + $0x68] sm:$0xf]
  %v51 = vld [vmem:[%s1 + $0x6c] sm:$0xf]
  %v52 = vld [vmem:[%s1 + $0x70] sm:$0xf]
  %v53 = vld [vmem:[%s1 + $0x74] sm:$0xf]
  %v54 = vld [vmem:[%s1 + $0x78] sm:$0xf]
  %v55 = vld [vmem:[%s1 + $0x7c] sm:$0xf]
  %v57 = vunpack.c.l.b16 %v23
  %v58 = vunpack.c.h.b16 %v23
  %v59 = vpack.c.b16 %v57, %v57
  %v60 = vpack.c.b16 %v58, %v58
  %v95 = vunpack.c.l.b16 %v24
  %v96 = vunpack.c.l.b16 %v25
  %v97 = vunpack.c.l.b16 %v26
  %v98 = vunpack.c.l.b16 %v27
  %v99 = vunpack.c.l.b16 %v28
  %v100 = vunpack.c.l.b16 %v29
  %v101 = vunpack.c.l.b16 %v30
  %v102 = vunpack.c.l.b16 %v31
  %v103 = vunpack.c.l.b16 %v32
  %v104 = vunpack.c.l.b16 %v33
  %v105 = vunpack.c.l.b16 %v34
  %v106 = vunpack.c.l.b16 %v35
  %v107 = vunpack.c.l.b16 %v36
  %v108 = vunpack.c.l.b16 %v37
  %v109 = vunpack.c.l.b16 %v38
  %v110 = vunpack.c.l.b16 %v39
  %v111 = vunpack.c.l.b16 %v40
  %v112 = vunpack.c.l.b16 %v41
  %v113 = vunpack.c.l.b16 %v42
  %v114 = vunpack.c.l.b16 %v43
  %v115 = vunpack.c.l.b16 %v44
  %v116 = vunpack.c.l.b16 %v45
  %v117 = vunpack.c.l.b16 %v46
  %v118 = vunpack.c.l.b16 %v47
  %v119 = vunpack.c.l.b16 %v48
  %v120 = vunpack.c.l.b16 %v49
  %v121 = vunpack.c.l.b16 %v50
  %v122 = vunpack.c.l.b16 %v51
  %v123 = vunpack.c.l.b16 %v52
  %v124 = vunpack.c.l.b16 %v53
  %v125 = vunpack.c.l.b16 %v54
  %v126 = vunpack.c.l.b16 %v55
  %v127 = vpack.c.b16 %v96, %v95
  %v128 = vpack.c.b16 %v98, %v97
  %v129 = vpack.c.b16 %v100, %v99
  %v130 = vpack.c.b16 %v102, %v101
  %v131 = vpack.c.b16 %v104, %v103
  %v132 = vpack.c.b16 %v106, %v105
  %v133 = vpack.c.b16 %v108, %v107
  %v134 = vpack.c.b16 %v110, %v109
  %v135 = vpack.c.b16 %v112, %v111
  %v136 = vpack.c.b16 %v114, %v113
  %v137 = vpack.c.b16 %v116, %v115
  %v138 = vpack.c.b16 %v118, %v117
  %v139 = vpack.c.b16 %v120, %v119
  %v140 = vpack.c.b16 %v122, %v121
  %v141 = vpack.c.b16 %v124, %v123
  %v142 = vpack.c.b16 %v126, %v125
  %159 = vmatpush.bf16.msra.mxu0 %v134
  %160 = vmatpush.bf16.msra.mxu0 %v133
  %161 = vmatpush.bf16.msra.mxu0 %v132
  %162 = vmatpush.bf16.msra.mxu0 %v131
  %163 = vmatpush.bf16.msra.mxu0 %v130
  %164 = vmatpush.bf16.msra.mxu0 %v129
  %165 = vmatpush.bf16.msra.mxu0 %v128
  %166 = vmatpush.bf16.msra.mxu0 %v127
  %167 = vmatmul.bf16.gmra.mxu0 %v59
  %v168 = vpop.f32.mrf.mxu0
  %v169 = vadd.f32 0.0, %v168
  %v170 = vpop.f32.mrf.mxu0
  %171 = vdwg.mxu0
  %172 = vmatpush.bf16.msra.mxu0 %v142
  %173 = vmatpush.bf16.msra.mxu0 %v141
  %174 = vmatpush.bf16.msra.mxu0 %v140
  %175 = vmatpush.bf16.msra.mxu0 %v139
  %176 = vmatpush.bf16.msra.mxu0 %v138
  %177 = vmatpush.bf16.msra.mxu0 %v137
  %178 = vmatpush.bf16.msra.mxu0 %v136
  %179 = vmatpush.bf16.msra.mxu0 %v135
  %180 = vmatmul.bf16.gmra.mxu0 %v60
  %v181 = vpop.f32.mrf.mxu0
  %v182 = vadd.f32 %v169, %v181
  %v183 = vpop.f32.mrf.mxu0
  %184 = vdwg.mxu0
  %v185 = vadd.f32 %v22, %v182
  %186 = vst [vmem:[#allocation2] sm:$0xff] %v185
  // Predicated region
  $region22: #{gnn_forward.5} parent=0 // pred_check
    %p187 = pneg %p17
  $region23: #{gnn_forward.5} parent=0 // pred_check_branch
    %189 = sbr.rel (%p187) target = $region25
  $region24: #{gnn_forward.5} parent=0 // pred_region
    %v190 = vld [vmem:[#allocation2] sm:$0xff]
    %v191 = vld [vmem:[%s2] sm:$0x1]
    %v193 = vperm.slane %v191, 0
    %v195 = vmul.f32 %v190, %v193
    %196 = vadd.xlane.f32.xlu0 %v195
    %v197 = vpop.xlane.xlu0 %196
    %v198 = vld [vmem:[%s3] sm:$0x1]
    %v200 = vperm.slane %v198, 0
    %v202 = vadd.f32 %v197, %v200
    %203 = vst [vmem:[%s4] sm:$0xff] %v202
  $region25: #{gnn_forward.5} parent=0 // pred_fallthru
    _
  // Predicated region
  $region26: #{gnn_forward.5} parent=0 // pred_check
    _
  $region27: #{gnn_forward.5} parent=0 // pred_check_branch
    %205 = sbr.rel (0) target = $region29
  $region28: #{gnn_forward.5} parent=0 // pred_region
    _
  $region29: #{gnn_forward.5} parent=0 // pred_fallthru
    _
  // Predicated region
  $region30: #{gnn_forward.5} parent=0 // pred_check
    _
  $region31: #{gnn_forward.5} parent=0 // pred_check_branch
    %207 = sbr.rel (0) target = $region33
  $region32: #{gnn_forward.5} parent=0 // pred_region
    _
  $region33: #{gnn_forward.5} parent=0 // pred_fallthru
    _

// kernel: gnn_forward.4
$region0: #{gnn_forward.4}
  #allocation0 [shape = 'u32[]', space=smem, size = 0x4, offset = 0x4, fixed_abs, tag = 'smem constant byte address 0x4 - core index']
  #allocation1 [shape = 'u32[72,128]{1,0:T(1,128)}', space=vmem, size = 0x9000, scoped, tag = 'internal scratch']
  %s0 = inlined_call_operand.vmem [shape: bf16[256,256], index: 0, kind: input, shape index: {}]
  %s1 = inlined_call_operand.vmem [shape: bf16[256,128], index: 1, kind: input, shape index: {}]
  %s2 = inlined_call_operand.vmem [shape: f32[1,128], index: 2, kind: input, shape index: {}]
  %s3 = inlined_call_operand.vmem [shape: bf16[256,128], index: 3, kind: output, shape index: {}]
  %s4 = sld [smem:[#allocation0]]
  $region45: #{gnn_forward.4} parent=0
    _
  %s6 = ssub.s32 1, %s4
  %s7 = scalar_select 0, %s6, %s4
  loop: start=0, step=1, limit=4
  $region2: #{gnn_forward.4} parent=0 // loop_pre_header
    _
  $region3: #{gnn_forward.4} parent=0 // loop_header
    %s9 = sphi 0, %s13
    %p10 = scmp.ge.s32.totalorder %s9, 4
    %s19 = sphi 0, %s21
    %s22 = sphi 0, %s19
    %s23 = sphi 0, %s22
    %s39 = sphi 0, %s23
    %s43 = sphi 0, %s43
    %s45 = sphi 0, %s43
    %s46 = sphi 0, %s45
    %s60 = sphi 0, %s46
    %s64 = sphi 0, %s64
    %s66 = sphi 0, %s64
    %s67 = sphi 0, %s66
    %s81 = sphi 0, %s67
    %s87 = sphi 0, %s89
    %s90 = sphi 0, %s87
    %s91 = sphi 0, %s90
    %s107 = sphi 0, %s91
  $region4: #{gnn_forward.4} parent=0 // loop_header_branch
    %12 = sbr.rel (%p10) target = $region8
  $region5: #{gnn_forward.4} parent=0 // loop_body
    %s14 = ssub.s32 %s9, 1
    %s15 = ssub.s32 %s9, 2
    %s16 = sadd.s32 %s9, 1
    %s17 = ssub.s32 %s9, %s16
    %p18 = scmp.eq.s32.totalorder %s17, 0
    %s20 = sadd.s32 %s19, 1
    %s21 = scalar_select %p18, %s19, %s20
    %p24 = pneg %p18
    %p25 = scmp.eq.s32.totalorder %s9, 1
    %p26 = por %p24, %p25
    %p27 = scmp.ne.s32.totalorder %s19, %s22
    %p28 = scmp.eq.s32.totalorder %s9, 0
    %p29 = por %p27, %p28
    %p30 = scmp.ne.s32.totalorder %s19, %s22
    %p31 = scmp.eq.s32.totalorder %s14, 1
    %p32 = por %p30, %p31
    %p33 = scmp.ne.s32.totalorder %s22, %s23
    %p34 = scmp.eq.s32.totalorder %s14, 0
    %p35 = por %p33, %p34
    %p36 = scmp.ne.s32.totalorder %s22, %s23
    %p37 = scmp.eq.s32.totalorder %s15, 1
    %p38 = por %p36, %p37
    %p40 = scmp.ne.s32.totalorder %s23, %s39
    %p41 = scmp.eq.s32.totalorder %s15, 0
    %p42 = por %p40, %p41
    %s44 = sadd.s32 %s43, 1
    %p47 = scmp.eq.s32.totalorder %s9, 1
    %p48 = scmp.ne.s32.totalorder %s43, %s45
    %p49 = scmp.eq.s32.totalorder %s9, 0
    %p50 = por %p48, %p49
    %p51 = scmp.ne.s32.totalorder %s43, %s45
    %p52 = scmp.eq.s32.totalorder %s14, 1
    %p53 = por %p51, %p52
    %p54 = scmp.ne.s32.totalorder %s45, %s46
    %p55 = scmp.eq.s32.totalorder %s14, 0
    %p56 = por %p54, %p55
    %p57 = scmp.ne.s32.totalorder %s45, %s46
    %p58 = scmp.eq.s32.totalorder %s15, 1
    %p59 = por %p57, %p58
    %p61 = scmp.ne.s32.totalorder %s46, %s60
    %p62 = scmp.eq.s32.totalorder %s15, 0
    %p63 = por %p61, %p62
    %s65 = sadd.s32 %s64, 1
    %p68 = scmp.eq.s32.totalorder %s9, 1
    %p69 = scmp.ne.s32.totalorder %s64, %s66
    %p70 = scmp.eq.s32.totalorder %s9, 0
    %p71 = por %p69, %p70
    %p72 = scmp.ne.s32.totalorder %s64, %s66
    %p73 = scmp.eq.s32.totalorder %s14, 1
    %p74 = por %p72, %p73
    %p75 = scmp.ne.s32.totalorder %s66, %s67
    %p76 = scmp.eq.s32.totalorder %s14, 0
    %p77 = por %p75, %p76
    %p78 = scmp.ne.s32.totalorder %s66, %s67
    %p79 = scmp.eq.s32.totalorder %s15, 1
    %p80 = por %p78, %p79
    %p82 = scmp.ne.s32.totalorder %s67, %s81
    %p83 = scmp.eq.s32.totalorder %s15, 0
    %p84 = por %p82, %p83
    %s85 = ssub.s32 %s9, %s16
    %p86 = scmp.eq.s32.totalorder %s85, 0
    %s88 = sadd.s32 %s87, 1
    %s89 = scalar_select %p86, %s87, %s88
    %p92 = pneg %p86
    %p93 = scmp.eq.s32.totalorder %s9, 1
    %p94 = por %p92, %p93
    %p95 = scmp.ne.s32.totalorder %s87, %s90
    %p96 = scmp.eq.s32.totalorder %s9, 0
    %p97 = por %p95, %p96
    %p98 = scmp.ne.s32.totalorder %s87, %s90
    %p99 = scmp.eq.s32.totalorder %s14, 1
    %p100 = por %p98, %p99
    %p101 = scmp.ne.s32.totalorder %s90, %s91
    %p102 = scmp.eq.s32.totalorder %s14, 0
    %p103 = por %p101, %p102
    %p104 = scmp.ne.s32.totalorder %s90, %s91
    %p105 = scmp.eq.s32.totalorder %s15, 1
    %p106 = por %p104, %p105
    %p108 = scmp.ne.s32.totalorder %s91, %s107
    %p109 = scmp.eq.s32.totalorder %s15, 0
    %p110 = por %p108, %p109
    %p111 = scmp.le.s32.totalorder 1, %s9
    %p112 = scmp.lt.s32.totalorder %s9, 3
    %p113 = pnand %p111, %p112
    %p114 = pneg %p113
    // Predicated region
    $region9: #{gnn_forward.4} parent=5 // pred_check
      _
    $region10: #{gnn_forward.4} parent=5 // pred_check_branch
      %116 = sbr.rel (%p113) target = $region12
    $region11: #{gnn_forward.4} parent=5 // pred_region
      %s117 = ssub.s32 %s9, 1
      // Predicated region
      $region13: #{gnn_forward.4} parent=11 // pred_check
        %p118 = pneg %p56
      $region14: #{gnn_forward.4} parent=11 // pred_check_branch
        %120 = sbr.rel (%p118) target = $region16
      $region15: #{gnn_forward.4} parent=11 // pred_region
        _
      $region16: #{gnn_forward.4} parent=11 // pred_fallthru
        _
      // Predicated region
      $region17: #{gnn_forward.4} parent=11 // pred_check
        %p121 = pneg %p77
      $region18: #{gnn_forward.4} parent=11 // pred_check_branch
        %123 = sbr.rel (%p121) target = $region20
      $region19: #{gnn_forward.4} parent=11 // pred_region
        _
      $region20: #{gnn_forward.4} parent=11 // pred_fallthru
        _
    $region12: #{gnn_forward.4} parent=5 // pred_fallthru
      _
    %p124 = scmp.lt.s32.totalorder %s9, 2
    // Predicated region
    $region21: #{gnn_forward.4} parent=5 // pred_check
      %p125 = pneg %p124
    $region22: #{gnn_forward.4} parent=5 // pred_check_branch
      %127 = sbr.rel (%p125) target = $region24
    $region23: #{gnn_forward.4} parent=5 // pred_region
      // Predicated region
      $region25: #{gnn_forward.4} parent=23 // pred_check
        %p128 = pneg %p29
      $region26: #{gnn_forward.4} parent=23 // pred_check_branch
        %130 = sbr.rel (%p128) target = $region28
      $region27: #{gnn_forward.4} parent=23 // pred_region
        %s131 = smul.u32 16, %s9
        %p132 = scmp.lt.s32.totalorder %s131, 31
        %s133 = scalar_select %p132, %s131, 31
        %s134 = smul.addr %s133, 2
        %s135 = smul.addr %s134, 4
        %s136 = scalar_lea.vmem %s0, %s135
        %s137 = smul.u32 16, %s9
      $region28: #{gnn_forward.4} parent=23 // pred_fallthru
        _
    $region24: #{gnn_forward.4} parent=5 // pred_fallthru
      _
    %p138 = scmp.le.s32.totalorder 1, %s9
    %p139 = scmp.lt.s32.totalorder %s9, 3
    %p140 = pnand %p138, %p139
    %p141 = pneg %p140
    // Predicated region
    $region29: #{gnn_forward.4} parent=5 // pred_check
      _
    $region30: #{gnn_forward.4} parent=5 // pred_check_branch
      %143 = sbr.rel (%p140) target = $region32
    $region31: #{gnn_forward.4} parent=5 // pred_region
      %s144 = ssub.s32 %s9, 1
      %s145 = smul.u32 16, %s14
      %p146 = scmp.lt.s32.totalorder %s145, 31
      %s147 = scalar_select %p146, %s145, 31
      %s148 = smul.addr %s147, 2
      %s149 = smul.addr %s148, 4
      %s150 = scalar_lea.vmem %s0, %s149
      %p151 = pneg %p35
      %p152 = pneg %p32
      %p153 = pneg %p56
      %p154 = pneg %p53
      %p155 = pneg %p77
      %p156 = pneg %p74
      %p157 = pneg %p103
      %p158 = pneg %p100
      %s159 = smul.u32 16, %s14
      %p160 = scmp.lt.s32.totalorder %s159, 31
      %s161 = scalar_select %p160, %s159, 31
      %s162 = smul.addr %s161, 4
      %s163 = scalar_lea.vmem %s3, %s162
      %s164 = smul.u32 16, %s14
      %p165 = scmp.lt.s32.totalorder %s164, 31
      %s166 = scalar_select %p165, %s164, 31
      %s167 = smul.addr %s166, 2
      %s168 = smul.addr %s167, 4
      %s169 = scalar_lea.vmem %s0, %s168
      %s170 = smul.u32 16, %s14
      %s171 = smul.u32 16, %s14
      %p172 = scmp.lt.s32.totalorder %s171, 31
      %s173 = scalar_select %p172, %s171, 31
      %s174 = smul.addr %s173, 4
      %s175 = scalar_lea.vmem %s3, %s174
      %s176 = smul.u32 16, %s14
      %v177 = vld [vmem:[%s169] sm:$0xff]
      %v178 = vld [vmem:[%s169 + $0x8] sm:$0xff]
      %v179 = vld [vmem:[%s169 + $0x10] sm:$0xff]
      %v180 = vld [vmem:[%s169 + $0x18] sm:$0xff]
      %v181 = vld [vmem:[%s169 + $0x20] sm:$0xff]
      %v182 = vld [vmem:[%s169 + $0x28] sm:$0xff]
      %v183 = vld [vmem:[%s169 + $0x30] sm:$0xff]
      %v184 = vld [vmem:[%s169 + $0x38] sm:$0xff]
      %v185 = vld [vmem:[%s169 + $0x40] sm:$0xff]
      %v186 = vld [vmem:[%s169 + $0x48] sm:$0xff]
      %v187 = vld [vmem:[%s169 + $0x50] sm:$0xff]
      %v188 = vld [vmem:[%s169 + $0x58] sm:$0xff]
      %v189 = vld [vmem:[%s169 + $0x60] sm:$0xff]
      %v190 = vld [vmem:[%s169 + $0x68] sm:$0xff]
      %v191 = vld [vmem:[%s169 + $0x70] sm:$0xff]
      %v192 = vld [vmem:[%s169 + $0x78] sm:$0xff]
      %v193 = vld [vmem:[%s1] sm:$0xf]
      %v194 = vld [vmem:[%s1 + $0x4] sm:$0xf]
      %v195 = vld [vmem:[%s1 + $0x8] sm:$0xf]
      %v196 = vld [vmem:[%s1 + $0xc] sm:$0xf]
      %v197 = vld [vmem:[%s1 + $0x10] sm:$0xf]
      %v198 = vld [vmem:[%s1 + $0x14] sm:$0xf]
      %v199 = vld [vmem:[%s1 + $0x18] sm:$0xf]
      %v200 = vld [vmem:[%s1 + $0x1c] sm:$0xf]
      %v201 = vld [vmem:[%s1 + $0x20] sm:$0xf]
      %v202 = vld [vmem:[%s1 + $0x24] sm:$0xf]
      %v203 = vld [vmem:[%s1 + $0x28] sm:$0xf]
      %v204 = vld [vmem:[%s1 + $0x2c] sm:$0xf]
      %v205 = vld [vmem:[%s1 + $0x30] sm:$0xf]
      %v206 = vld [vmem:[%s1 + $0x34] sm:$0xf]
      %v207 = vld [vmem:[%s1 + $0x38] sm:$0xf]
      %v208 = vld [vmem:[%s1 + $0x3c] sm:$0xf]
      %v209 = vld [vmem:[%s1 + $0x40] sm:$0xf]
      %v210 = vld [vmem:[%s1 + $0x44] sm:$0xf]
      %v211 = vld [vmem:[%s1 + $0x48] sm:$0xf]
      %v212 = vld [vmem:[%s1 + $0x4c] sm:$0xf]
      %v213 = vld [vmem:[%s1 + $0x50] sm:$0xf]
      %v214 = vld [vmem:[%s1 + $0x54] sm:$0xf]
      %v215 = vld [vmem:[%s1 + $0x58] sm:$0xf]
      %v216 = vld [vmem:[%s1 + $0x5c] sm:$0xf]
      %v217 = vld [vmem:[%s1 + $0x60] sm:$0xf]
      %v218 = vld [vmem:[%s1 + $0x64] sm:$0xf]
      %v219 = vld [vmem:[%s1 + $0x68] sm:$0xf]
      %v220 = vld [vmem:[%s1 + $0x6c] sm:$0xf]
      %v221 = vld [vmem:[%s1 + $0x70] sm:$0xf]
      %v222 = vld [vmem:[%s1 + $0x74] sm:$0xf]
      %v223 = vld [vmem:[%s1 + $0x78] sm:$0xf]
      %v224 = vld [vmem:[%s1 + $0x7c] sm:$0xf]
      %v225 = vld [vmem:[%s2] sm:$0x1]
      %v227 = vperm.slane %v225, 0
      %v245 = vunpack.c.l.b16 %v177
      %v246 = vunpack.c.h.b16 %v177
      %v247 = vunpack.c.l.b16 %v178
      %v248 = vunpack.c.h.b16 %v178
      %v249 = vunpack.c.l.b16 %v179
      %v250 = vunpack.c.h.b16 %v179
      %v251 = vunpack.c.l.b16 %v180
      %v252 = vunpack.c.h.b16 %v180
      %v253 = vunpack.c.l.b16 %v181
      %v254 = vunpack.c.h.b16 %v181
      %v255 = vunpack.c.l.b16 %v182
      %v256 = vunpack.c.h.b16 %v182
      %v257 = vunpack.c.l.b16 %v183
      %v258 = vunpack.c.h.b16 %v183
      %v259 = vunpack.c.l.b16 %v184
      %v260 = vunpack.c.h.b16 %v184
      %v261 = vunpack.c.l.b16 %v185
      %v262 = vunpack.c.h.b16 %v185
      %v263 = vunpack.c.l.b16 %v186
      %v264 = vunpack.c.h.b16 %v186
      %v265 = vunpack.c.l.b16 %v187
      %v266 = vunpack.c.h.b16 %v187
      %v267 = vunpack.c.l.b16 %v188
      %v268 = vunpack.c.h.b16 %v188
      %v269 = vunpack.c.l.b16 %v189
      %v270 = vunpack.c.h.b16 %v189
      %v271 = vunpack.c.l.b16 %v190
      %v272 = vunpack.c.h.b16 %v190
      %v273 = vunpack.c.l.b16 %v191
      %v274 = vunpack.c.h.b16 %v191
      %v275 = vunpack.c.l.b16 %v192
      %v276 = vunpack.c.h.b16 %v192
      %v277 = vpack.c.b16 %v247, %v245
      %v278 = vpack.c.b16 %v248, %v246
      %v279 = vpack.c.b16 %v251, %v249
      %v280 = vpack.c.b16 %v252, %v250
      %v281 = vpack.c.b16 %v255, %v253
      %v282 = vpack.c.b16 %v256, %v254
      %v283 = vpack.c.b16 %v259, %v257
      %v284 = vpack.c.b16 %v260, %v258
      %v285 = vpack.c.b16 %v263, %v261
      %v286 = vpack.c.b16 %v264, %v262
      %v287 = vpack.c.b16 %v267, %v265
      %v288 = vpack.c.b16 %v268, %v266
      %v289 = vpack.c.b16 %v271, %v269
      %v290 = vpack.c.b16 %v272, %v270
      %v291 = vpack.c.b16 %v275, %v273
      %v292 = vpack.c.b16 %v276, %v274
      %v341 = vunpack.c.l.b16 %v193
      %v342 = vunpack.c.l.b16 %v194
      %v343 = vunpack.c.l.b16 %v195
      %v344 = vunpack.c.l.b16 %v196
      %v345 = vunpack.c.l.b16 %v197
      %v346 = vunpack.c.l.b16 %v198
      %v347 = vunpack.c.l.b16 %v199
      %v348 = vunpack.c.l.b16 %v200
      %v349 = vunpack.c.l.b16 %v201
      %v350 = vunpack.c.l.b16 %v202
      %v351 = vunpack.c.l.b16 %v203
      %v352 = vunpack.c.l.b16 %v204
      %v353 = vunpack.c.l.b16 %v205
      %v354 = vunpack.c.l.b16 %v206
      %v355 = vunpack.c.l.b16 %v207
      %v356 = vunpack.c.l.b16 %v208
      %v357 = vunpack.c.l.b16 %v209
      %v358 = vunpack.c.l.b16 %v210
      %v359 = vunpack.c.l.b16 %v211
      %v360 = vunpack.c.l.b16 %v212
      %v361 = vunpack.c.l.b16 %v213
      %v362 = vunpack.c.l.b16 %v214
      %v363 = vunpack.c.l.b16 %v215
      %v364 = vunpack.c.l.b16 %v216
      %v365 = vunpack.c.l.b16 %v217
      %v366 = vunpack.c.l.b16 %v218
      %v367 = vunpack.c.l.b16 %v219
      %v368 = vunpack.c.l.b16 %v220
      %v369 = vunpack.c.l.b16 %v221
      %v370 = vunpack.c.l.b16 %v222
      %v371 = vunpack.c.l.b16 %v223
      %v372 = vunpack.c.l.b16 %v224
      %v373 = vpack.c.b16 %v342, %v341
      %v374 = vpack.c.b16 %v344, %v343
      %v375 = vpack.c.b16 %v346, %v345
      %v376 = vpack.c.b16 %v348, %v347
      %v377 = vpack.c.b16 %v350, %v349
      %v378 = vpack.c.b16 %v352, %v351
      %v379 = vpack.c.b16 %v354, %v353
      %v380 = vpack.c.b16 %v356, %v355
      %v381 = vpack.c.b16 %v358, %v357
      %v382 = vpack.c.b16 %v360, %v359
      %v383 = vpack.c.b16 %v362, %v361
      %v384 = vpack.c.b16 %v364, %v363
      %v385 = vpack.c.b16 %v366, %v365
      %v386 = vpack.c.b16 %v368, %v367
      %v387 = vpack.c.b16 %v370, %v369
      %v388 = vpack.c.b16 %v372, %v371
      %405 = vmatpush.bf16.msra.mxu0 %v380
      %406 = vmatpush.bf16.msra.mxu0 %v379
      %407 = vmatpush.bf16.msra.mxu0 %v378
      %408 = vmatpush.bf16.msra.mxu0 %v377
      %409 = vmatpush.bf16.msra.mxu0 %v376
      %410 = vmatpush.bf16.msra.mxu0 %v375
      %411 = vmatpush.bf16.msra.mxu0 %v374
      %412 = vmatpush.bf16.msra.mxu0 %v373
      %413 = vmatmul.bf16.gmra.mxu0 %v277
      %v414 = vpop.f32.mrf.mxu0
      %v415 = vadd.f32 %v227, %v414
      %v416 = vpop.f32.mrf.mxu0
      %v417 = vadd.f32 %v227, %v416
      %418 = vmatmul.bf16.gmra.mxu0 %v279
      %v419 = vpop.f32.mrf.mxu0
      %v420 = vadd.f32 %v227, %v419
      %v421 = vpop.f32.mrf.mxu0
      %v422 = vadd.f32 %v227, %v421
      %423 = vmatmul.bf16.gmra.mxu0 %v281
      %v424 = vpop.f32.mrf.mxu0
      %v425 = vadd.f32 %v227, %v424
      %v426 = vpop.f32.mrf.mxu0
      %v427 = vadd.f32 %v227, %v426
      %428 = vmatmul.bf16.gmra.mxu0 %v283
      %v429 = vpop.f32.mrf.mxu0
      %v430 = vadd.f32 %v227, %v429
      %v431 = vpop.f32.mrf.mxu0
      %v432 = vadd.f32 %v227, %v431
      %433 = vmatmul.bf16.gmra.mxu0 %v285
      %v434 = vpop.f32.mrf.mxu0
      %v435 = vadd.f32 %v227, %v434
      %v436 = vpop.f32.mrf.mxu0
      %v437 = vadd.f32 %v227, %v436
      %438 = vmatmul.bf16.gmra.mxu0 %v287
      %v439 = vpop.f32.mrf.mxu0
      %v440 = vadd.f32 %v227, %v439
      %v441 = vpop.f32.mrf.mxu0
      %v442 = vadd.f32 %v227, %v441
      %443 = vmatmul.bf16.gmra.mxu0 %v289
      %v444 = vpop.f32.mrf.mxu0
      %v445 = vadd.f32 %v227, %v444
      %v446 = vpop.f32.mrf.mxu0
      %v447 = vadd.f32 %v227, %v446
      %448 = vmatmul.bf16.gmra.mxu0 %v291
      %v449 = vpop.f32.mrf.mxu0
      %v450 = vadd.f32 %v227, %v449
      %v451 = vpop.f32.mrf.mxu0
      %v452 = vadd.f32 %v227, %v451
      %453 = vdwg.mxu0
      %454 = vmatpush.bf16.msra.mxu0 %v388
      %455 = vmatpush.bf16.msra.mxu0 %v387
      %456 = vmatpush.bf16.msra.mxu0 %v386
      %457 = vmatpush.bf16.msra.mxu0 %v385
      %458 = vmatpush.bf16.msra.mxu0 %v384
      %459 = vmatpush.bf16.msra.mxu0 %v383
      %460 = vmatpush.bf16.msra.mxu0 %v382
      %461 = vmatpush.bf16.msra.mxu0 %v381
      %462 = vmatmul.bf16.gmra.mxu0 %v278
      %v463 = vpop.f32.mrf.mxu0
      %v464 = vadd.f32 %v415, %v463
      %v465 = vpop.f32.mrf.mxu0
      %v466 = vadd.f32 %v417, %v465
      %467 = vmatmul.bf16.gmra.mxu0 %v280
      %v468 = vpop.f32.mrf.mxu0
      %v469 = vadd.f32 %v420, %v468
      %v470 = vpop.f32.mrf.mxu0
      %v471 = vadd.f32 %v422, %v470
      %472 = vmatmul.bf16.gmra.mxu0 %v282
      %v473 = vpop.f32.mrf.mxu0
      %v474 = vadd.f32 %v425, %v473
      %v475 = vpop.f32.mrf.mxu0
      %v476 = vadd.f32 %v427, %v475
      %477 = vmatmul.bf16.gmra.mxu0 %v284
      %v478 = vpop.f32.mrf.mxu0
      %v479 = vadd.f32 %v430, %v478
      %v480 = vpop.f32.mrf.mxu0
      %v481 = vadd.f32 %v432, %v480
      %482 = vmatmul.bf16.gmra.mxu0 %v286
      %v483 = vpop.f32.mrf.mxu0
      %v484 = vadd.f32 %v435, %v483
      %v485 = vpop.f32.mrf.mxu0
      %v486 = vadd.f32 %v437, %v485
      %487 = vmatmul.bf16.gmra.mxu0 %v288
      %v488 = vpop.f32.mrf.mxu0
      %v489 = vadd.f32 %v440, %v488
      %v490 = vpop.f32.mrf.mxu0
      %v491 = vadd.f32 %v442, %v490
      %492 = vmatmul.bf16.gmra.mxu0 %v290
      %v493 = vpop.f32.mrf.mxu0
      %v494 = vadd.f32 %v445, %v493
      %v495 = vpop.f32.mrf.mxu0
      %v496 = vadd.f32 %v447, %v495
      %497 = vmatmul.bf16.gmra.mxu0 %v292
      %v498 = vpop.f32.mrf.mxu0
      %v499 = vadd.f32 %v450, %v498
      %v500 = vpop.f32.mrf.mxu0
      %v501 = vadd.f32 %v452, %v500
      %502 = vdwg.mxu0
      %v503 = vmax.f32 %v464, 0.0
      %v504 = vmax.f32 %v466, 0.0
      %v505 = vmax.f32 %v469, 0.0
      %v506 = vmax.f32 %v471, 0.0
      %v507 = vmax.f32 %v474, 0.0
      %v508 = vmax.f32 %v476, 0.0
      %v509 = vmax.f32 %v479, 0.0
      %v510 = vmax.f32 %v481, 0.0
      %v511 = vmax.f32 %v484, 0.0
      %v512 = vmax.f32 %v486, 0.0
      %v513 = vmax.f32 %v489, 0.0
      %v514 = vmax.f32 %v491, 0.0
      %v515 = vmax.f32 %v494, 0.0
      %v516 = vmax.f32 %v496, 0.0
      %v517 = vmax.f32 %v499, 0.0
      %v518 = vmax.f32 %v501, 0.0
      %v519 = vpack.c.bf16 %v503, %v503
      %v520 = vpack.c.bf16 %v504, %v504
      %v521 = vpack.c.bf16 %v505, %v505
      %v522 = vpack.c.bf16 %v506, %v506
      %v523 = vpack.c.bf16 %v507, %v507
      %v524 = vpack.c.bf16 %v508, %v508
      %v525 = vpack.c.bf16 %v509, %v509
      %v526 = vpack.c.bf16 %v510, %v510
      %v527 = vpack.c.bf16 %v511, %v511
      %v528 = vpack.c.bf16 %v512, %v512
      %v529 = vpack.c.bf16 %v513, %v513
      %v530 = vpack.c.bf16 %v514, %v514
      %v531 = vpack.c.bf16 %v515, %v515
      %v532 = vpack.c.bf16 %v516, %v516
      %v533 = vpack.c.bf16 %v517, %v517
      %v534 = vpack.c.bf16 %v518, %v518
      %535 = vst [vmem:[%s175] sm:$0xf] %v519
      %536 = vst [vmem:[%s175 + $0x4] sm:$0xf] %v520
      %537 = vst [vmem:[%s175 + $0x8] sm:$0xf] %v521
      %538 = vst [vmem:[%s175 + $0xc] sm:$0xf] %v522
      %539 = vst [vmem:[%s175 + $0x10] sm:$0xf] %v523
      %540 = vst [vmem:[%s175 + $0x14] sm:$0xf] %v524
      %541 = vst [vmem:[%s175 + $0x18] sm:$0xf] %v525
      %542 = vst [vmem:[%s175 + $0x1c] sm:$0xf] %v526
      %543 = vst [vmem:[%s175 + $0x20] sm:$0xf] %v527
      %544 = vst [vmem:[%s175 + $0x24] sm:$0xf] %v528
      %545 = vst [vmem:[%s175 + $0x28] sm:$0xf] %v529
      %546 = vst [vmem:[%s175 + $0x2c] sm:$0xf] %v530
      %547 = vst [vmem:[%s175 + $0x30] sm:$0xf] %v531
      %548 = vst [vmem:[%s175 + $0x34] sm:$0xf] %v532
      %549 = vst [vmem:[%s175 + $0x38] sm:$0xf] %v533
      %550 = vst [vmem:[%s175 + $0x3c] sm:$0xf] %v534
      %s551 = smul.u32 16, %s14
      %p552 = scmp.lt.s32.totalorder %s551, 31
      %s553 = scalar_select %p552, %s551, 31
      %s554 = smul.addr %s553, 4
      %s555 = scalar_lea.vmem %s3, %s554
      // Predicated region
      $region33: #{gnn_forward.4} parent=31 // pred_check
        %p556 = pneg %p100
      $region34: #{gnn_forward.4} parent=31 // pred_check_branch
        %558 = sbr.rel (%p556) target = $region36
      $region35: #{gnn_forward.4} parent=31 // pred_region
        %s559 = smul.u32 16, %s14
      $region36: #{gnn_forward.4} parent=31 // pred_fallthru
        _
    $region32: #{gnn_forward.4} parent=5 // pred_fallthru
      _
    %p560 = scmp.le.s32.totalorder 2, %s9
    // Predicated region
    $region37: #{gnn_forward.4} parent=5 // pred_check
      %p561 = pneg %p560
    $region38: #{gnn_forward.4} parent=5 // pred_check_branch
      %563 = sbr.rel (%p561) target = $region40
    $region39: #{gnn_forward.4} parent=5 // pred_region
      %s564 = ssub.s32 %s9, 2
      // Predicated region
      $region41: #{gnn_forward.4} parent=39 // pred_check
        %p565 = pneg %p106
      $region42: #{gnn_forward.4} parent=39 // pred_check_branch
        %567 = sbr.rel (%p565) target = $region44
      $region43: #{gnn_forward.4} parent=39 // pred_region
        %s568 = smul.u32 16, %s15
        %p569 = scmp.lt.s32.totalorder %s568, 31
        %s570 = scalar_select %p569, %s568, 31
        %s571 = smul.addr %s570, 4
        %s572 = scalar_lea.vmem %s3, %s571
      $region44: #{gnn_forward.4} parent=39 // pred_fallthru
        _
    $region40: #{gnn_forward.4} parent=5 // pred_fallthru
      _
  $region6: #{gnn_forward.4} parent=0 // loop_footer
    %s13 = sadd.s32 1, %s9
  $region7: #{gnn_forward.4} parent=0 // loop_footer_branch
    %8 = sbr.rel target = $region3
  $region8: #{gnn_forward.4} parent=0 // loop_exit
    _

</llo_original>
